<compile_context>
chip_gen: v6e
topology: v6e:2x2x1
jax: 0.10.0
libtpu: 0.0.40
codegen_flags: <defaults>
</compile_context>

<pallas_src>
import functools

import jax
import jax.numpy as jnp
import numpy as np
from jax import lax
from jax.experimental import pallas as pl
from jax.experimental.pallas import tpu as pltpu


# ----------------------------------------------------------------------------
# Fused Pallas kernel
# ----------------------------------------------------------------------------
def _layer_norm(z, gamma, beta, eps=1e-3):
    # LayerNormalization from the original repo: unbiased std, eps added to std.
    mu = jnp.mean(z, axis=-1, keepdims=True)
    var = jnp.sum((z - mu) ** 2, axis=-1, keepdims=True) / (z.shape[-1] - 1)
    sigma = jnp.sqrt(var)
    return (z - mu) * pl.reciprocal(sigma + eps, approx=False) * gamma + beta


def encoder_layer_kernel(*refs, n_head, d_k, d_v, temper, use_attentions):
    """One batch element of the full EncoderLayer, everything resident in VMEM.

    refs layout (inputs then outputs):
      x(1,S,D), wqkv(D, n_head*(2*d_k+d_v)), proj_wT(n_head*d_v,D), proj_b(1,D),
      ln1_g(1,D), ln1_b(1,D),
      [wniceT(bm*n_head*S, D), wencT(D,D), afc_b(1,D)]        # only if use_attentions
      ffn_w1T(D,Dh), ffn_b1(1,Dh), ffn_w2T(Dh,D), ffn_b2(1,D), ln2_g(1,D), ln2_b(1,D),
      out(1,S,D), attn_out(n_head,1,S,S)
    """
    x_ref, wqkv_ref, proj_wt_ref, proj_b_ref, ln1_g_ref, ln1_b_ref = refs[:6]
    rest = refs[6:]
    if use_attentions is not None:
        wn_ref, we_ref, afc_b_ref = rest[:3]
        rest = rest[3:]
    (w1_ref, b1_ref, w2_ref, b2_ref, ln2_g_ref, ln2_b_ref,
     out_ref, attn_out_ref) = rest

    x = x_ref[0]                                                    # (S, D)
    inv_temper = 1.0 / temper

    # Fused QKV for all heads: one wide MXU matmul instead of 3*n_head tiny ones.
    qkv = jnp.dot(x, wqkv_ref[...], preferred_element_type=jnp.float32)
    q_off = 0
    k_off = n_head * d_k
    v_off = 2 * n_head * d_k

    head_outs = []
    nice_blocks = []
    for h in range(n_head):                                         # static unroll (n_head small)
        q_h = qkv[:, q_off + h * d_k: q_off + (h + 1) * d_k]        # (S, d_k)
        k_h = qkv[:, k_off + h * d_k: k_off + (h + 1) * d_k]        # (S, d_k)
        v_h = qkv[:, v_off + h * d_v: v_off + (h + 1) * d_v]        # (S, d_v)

        # Q @ K^T without materializing a transpose (contraction on last dims).
        scores = lax.dot_general(q_h, k_h, (((1,), (1,)), ((), ())),
                                 preferred_element_type=jnp.float32) * inv_temper
        m = jnp.max(scores, axis=-1, keepdims=True)
        e = jnp.exp(scores - m)
        attn = e * pl.reciprocal(jnp.sum(e, axis=-1, keepdims=True), approx=False)

        attn_out_ref[h, 0, :, :] = attn
        head_outs.append(jnp.dot(attn, v_h, preferred_element_type=jnp.float32))

        if use_attentions is True:
            nice_blocks.append(attn.T)
        elif use_attentions == "both":
            nice_blocks.append(jnp.concatenate([attn, attn.T], axis=1))

    heads = jnp.concatenate(head_outs, axis=1)                      # (S, n_head*d_v), head-major

    # Output projection + residual + LayerNorm (dropout == identity in eval).
    y = jnp.dot(heads, proj_wt_ref[...], preferred_element_type=jnp.float32) + proj_b_ref[...]
    enc = _layer_norm(y + x, ln1_g_ref[...], ln1_b_ref[...])

    # reshape_self_attention + attn_fc, fused: cat([nice, enc]) @ W^T == nice@Wn^T + enc@We^T.
    if use_attentions is not None:
        nice = jnp.concatenate(nice_blocks, axis=1)                 # (S, bm*n_head*S)
        enc = (jnp.dot(nice, wn_ref[...], preferred_element_type=jnp.float32)
               + jnp.dot(enc, we_ref[...], preferred_element_type=jnp.float32)
               + afc_b_ref[...])

    # PositionwiseFeedForward (+ residual + LayerNorm).
    h1 = jnp.maximum(
        jnp.dot(enc, w1_ref[...], preferred_element_type=jnp.float32) + b1_ref[...], 0.0)
    y2 = jnp.dot(h1, w2_ref[...], preferred_element_type=jnp.float32) + b2_ref[...]
    out_ref[0] = _layer_norm(y2 + enc, ln2_g_ref[...], ln2_b_ref[...])


# ----------------------------------------------------------------------------
# Wrapper: weight pre-fusion / pre-transpose + single pallas_call
# ----------------------------------------------------------------------------
def encoder_layer_forward(x, params, *, use_attentions, n_max_seq):
    B, S, D = x.shape
    n_head, _, d_k = params["w_qs"].shape
    d_v = params["w_vs"].shape[2]
    temper = float(np.sqrt(D))  # original repo scales by sqrt(d_model)
    Dh = params["ffn_w1"].shape[0]

    # One-time weight preprocessing (outside the kernel, amortized by XLA).
    wqkv = jnp.concatenate(
        [
            jnp.transpose(params["w_qs"], (1, 0, 2)).reshape(D, n_head * d_k),
            jnp.transpose(params["w_ks"], (1, 0, 2)).reshape(D, n_head * d_k),
            jnp.transpose(params["w_vs"], (1, 0, 2)).reshape(D, n_head * d_v),
        ],
        axis=1,
    )                                                  # (D, n_head*(2*d_k+d_v))
    proj_wt = params["proj_w"].T                       # (n_head*d_v, D)
    ffn_w1t = params["ffn_w1"].T                       # (D, Dh)
    ffn_w2t = params["ffn_w2"].T                       # (Dh, D)

    full2d = lambda arr: pl.BlockSpec(arr.shape, lambda b: (0, 0))

    inputs = [x, wqkv, proj_wt, params["proj_b"], params["ln1_g"], params["ln1_b"]]
    in_specs = [
        pl.BlockSpec((1, S, D), lambda b: (b, 0, 0)),
        full2d(wqkv), full2d(proj_wt), full2d(params["proj_b"]),
        full2d(params["ln1_g"]), full2d(params["ln1_b"]),
    ]

    if use_attentions is not None:
        both_mult = 2 if use_attentions == "both" else 1
        nice_f = both_mult * n_head * n_max_seq
        w_nice_t = params["attn_fc_w"][:, :nice_f].T   # (nice_f, D)
        w_enc_t = params["attn_fc_w"][:, nice_f:].T    # (D, D)
        inputs += [w_nice_t, w_enc_t, params["attn_fc_b"]]
        in_specs += [full2d(w_nice_t), full2d(w_enc_t), full2d(params["attn_fc_b"])]

    inputs += [ffn_w1t, params["ffn_b1"], ffn_w2t, params["ffn_b2"],
               params["ln2_g"], params["ln2_b"]]
    in_specs += [full2d(ffn_w1t), full2d(params["ffn_b1"]), full2d(ffn_w2t),
                 full2d(params["ffn_b2"]), full2d(params["ln2_g"]),
                 full2d(params["ln2_b"])]

    kernel = functools.partial(
        encoder_layer_kernel,
        n_head=n_head, d_k=d_k, d_v=d_v, temper=temper, use_attentions=use_attentions,
    )

    enc_output, attn = pl.pallas_call(
        kernel,
        out_shape=(
            jax.ShapeDtypeStruct((B, S, D), jnp.float32),
            jax.ShapeDtypeStruct((n_head, B, S, S), jnp.float32),
        ),
        grid=(B,),
        in_specs=in_specs,
        out_specs=(
            pl.BlockSpec((1, S, D), lambda b: (b, 0, 0)),
            pl.BlockSpec((n_head, 1, S, S), lambda b: (0, b, 0, 0)),
        ),
        compiler_params=pltpu.CompilerParams(dimension_semantics=("parallel",)),
    )(*inputs)

    enc_slf_attn = attn.reshape(n_head * B, S, S)       # PyTorch (n_head*B, S, S) convention
    return enc_output, enc_slf_attn


# ----------------------------------------------------------------------------
# Pure-JAX reference (sanity check)
# ----------------------------------------------------------------------------
def reference_forward(x, params, *, use_attentions, n_max_seq):
    B, S, D = x.shape
    n_head = params["w_qs"].shape[0]
    d_v = params["w_vs"].shape[2]
    temper = np.sqrt(D)

    q = jnp.einsum("bsd,hdk->hbsk", x, params["w_qs"])
    k = jnp.einsum("bsd,hdk->hbsk", x, params["w_ks"])
    v = jnp.einsum("bsd,hdk->hbsk", x, params["w_vs"])
    scores = jnp.einsum("hbqk,hbsk->hbqs", q, k) / temper
    attn = jax.nn.softmax(scores, axis=-1)
    out = jnp.einsum("hbqs,hbsv->hbqv", attn, v)
    outputs = jnp.transpose(out, (1, 2, 0, 3)).reshape(B, S, n_head * d_v)

    def ln(z, g, b):
        mu = jnp.mean(z, axis=-1, keepdims=True)
        var = jnp.sum((z - mu) ** 2, axis=-1, keepdims=True) / (z.shape[-1] - 1)
        return (z - mu) / (jnp.sqrt(var) + 1e-3) * g + b

    enc = ln(outputs @ params["proj_w"].T + params["proj_b"] + x,
             params["ln1_g"], params["ln1_b"])

    if use_attentions is not None:
        x1 = attn
        if use_attentions is True:
            x1 = jnp.swapaxes(x1, 2, 3)
        elif use_attentions == "both":
            x1 = jnp.concatenate([x1, jnp.swapaxes(x1, 2, 3)], axis=3)
        nice = jnp.transpose(x1, (1, 2, 0, 3)).reshape(B, S, -1)
        cat = jnp.concatenate([nice, enc], axis=2)
        enc = cat @ params["attn_fc_w"].T + params["attn_fc_b"]

    h = jnp.maximum(enc @ params["ffn_w1"].T + params["ffn_b1"], 0.0)
    y = h @ params["ffn_w2"].T + params["ffn_b2"]
    enc = ln(y + enc, params["ln2_g"], params["ln2_b"])
    return enc, attn.reshape(n_head * B, S, S)


# ----------------------------------------------------------------------------
# Main
# ----------------------------------------------------------------------------
if __name__ == "__main__":
    # Module hyperparameters (small, consistent with the forward).
    B, S = 2, 8
    d_model, d_inner_hid = 32, 64
    n_head, d_k, d_v = 4, 8, 8
    n_max_seq = S
    use_attentions = "both"  # exercises the attn_fc path with both_mult = 2

    key = jax.random.PRNGKey(0)
    ks = jax.random.split(key, 10)
    f32 = jnp.float32

    params = {
        "w_qs": jax.random.normal(ks[0], (n_head, d_model, d_k), f32) / np.sqrt(d_model),
        "w_ks": jax.random.normal(ks[1], (n_head, d_model, d_k), f32) / np.sqrt(d_model),
        "w_vs": jax.random.normal(ks[2], (n_head, d_model, d_v), f32) / np.sqrt(d_model),
        "proj_w": jax.random.normal(ks[3], (d_model, n_head * d_v), f32) / np.sqrt(n_head * d_v),
        "proj_b": jnp.zeros((1, d_model), f32),
        "ln1_g": jnp.ones((1, d_model), f32),
        "ln1_b": jnp.zeros((1, d_model), f32),
        "attn_fc_w": jax.random.normal(
            ks[4], (d_model, d_model + 2 * n_head * n_max_seq), f32
        ) / np.sqrt(d_model + 2 * n_head * n_max_seq),
        "attn_fc_b": jnp.zeros((1, d_model), f32),
        "ffn_w1": jax.random.normal(ks[5], (d_inner_hid, d_model), f32) / np.sqrt(d_model),
        "ffn_b1": jnp.zeros((1, d_inner_hid), f32),
        "ffn_w2": jax.random.normal(ks[6], (d_model, d_inner_hid), f32) / np.sqrt(d_inner_hid),
        "ffn_b2": jnp.zeros((1, d_model), f32),
        "ln2_g": jnp.ones((1, d_model), f32),
        "ln2_b": jnp.zeros((1, d_model), f32),
    }

    x = jax.random.normal(ks[7], (B, S, d_model), f32)

    enc_output, enc_slf_attn = encoder_layer_forward(
        x, params, use_attentions=use_attentions, n_max_seq=n_max_seq
    )
    jax.block_until_ready((enc_output, enc_slf_attn))

    ref_out, ref_attn = reference_forward(
        x, params, use_attentions=use_attentions, n_max_seq=n_max_seq
    )
    np.testing.assert_allclose(np.asarray(enc_output), np.asarray(ref_out), rtol=1e-4, atol=1e-4)
    np.testing.assert_allclose(np.asarray(enc_slf_attn), np.asarray(ref_attn), rtol=1e-4, atol=1e-4)

    assert enc_output.shape == (B, S, d_model)
    assert enc_slf_attn.shape == (n_head * B, S, S)
    print("KERNEL_OK")
</pallas_src>

<mosaic_0001>
module attributes {stable_mosaic.version = 11 : i64} {
  func.func @encoder_layer_kernel(%arg0: i32, %arg1: memref<1x8x32xf32, #tpu.memory_space<vmem>>, %arg2: memref<32x96xf32, #tpu.memory_space<vmem>>, %arg3: memref<32x32xf32, #tpu.memory_space<vmem>>, %arg4: memref<1x32xf32, #tpu.memory_space<vmem>>, %arg5: memref<1x32xf32, #tpu.memory_space<vmem>>, %arg6: memref<1x32xf32, #tpu.memory_space<vmem>>, %arg7: memref<64x32xf32, #tpu.memory_space<vmem>>, %arg8: memref<32x32xf32, #tpu.memory_space<vmem>>, %arg9: memref<1x32xf32, #tpu.memory_space<vmem>>, %arg10: memref<32x64xf32, #tpu.memory_space<vmem>>, %arg11: memref<1x64xf32, #tpu.memory_space<vmem>>, %arg12: memref<64x32xf32, #tpu.memory_space<vmem>>, %arg13: memref<1x32xf32, #tpu.memory_space<vmem>>, %arg14: memref<1x32xf32, #tpu.memory_space<vmem>>, %arg15: memref<1x32xf32, #tpu.memory_space<vmem>>, %arg16: memref<1x8x32xf32, #tpu.memory_space<vmem>>, %arg17: memref<4x1x8x8xf32, #tpu.memory_space<vmem>>) attributes {dimension_semantics = [#tpu.dimension_semantics<parallel>], iteration_bounds = array<i64: 2>, scalar_prefetch = 0 : i64, scratch_operands = 0 : i64, tpu.core_type = #tpu.core_type<tc>, window_params = [{transform_indices = @transform_0, window_bounds = array<i64: 1, 8, 32>}, {pipeline_mode = #tpu.pipeline_mode<synchronous>, transform_indices = @transform_1, window_bounds = array<i64: 32, 96>}, {pipeline_mode = #tpu.pipeline_mode<synchronous>, transform_indices = @transform_2, window_bounds = array<i64: 32, 32>}, {pipeline_mode = #tpu.pipeline_mode<synchronous>, transform_indices = @transform_3, window_bounds = array<i64: 1, 32>}, {pipeline_mode = #tpu.pipeline_mode<synchronous>, transform_indices = @transform_4, window_bounds = array<i64: 1, 32>}, {pipeline_mode = #tpu.pipeline_mode<synchronous>, transform_indices = @transform_5, window_bounds = array<i64: 1, 32>}, {pipeline_mode = #tpu.pipeline_mode<synchronous>, transform_indices = @transform_6, window_bounds = array<i64: 64, 32>}, {pipeline_mode = #tpu.pipeline_mode<synchronous>, transform_indices = @transform_7, window_bounds = array<i64: 32, 32>}, {pipeline_mode = #tpu.pipeline_mode<synchronous>, transform_indices = @transform_8, window_bounds = array<i64: 1, 32>}, {pipeline_mode = #tpu.pipeline_mode<synchronous>, transform_indices = @transform_9, window_bounds = array<i64: 32, 64>}, {pipeline_mode = #tpu.pipeline_mode<synchronous>, transform_indices = @transform_10, window_bounds = array<i64: 1, 64>}, {pipeline_mode = #tpu.pipeline_mode<synchronous>, transform_indices = @transform_11, window_bounds = array<i64: 64, 32>}, {pipeline_mode = #tpu.pipeline_mode<synchronous>, transform_indices = @transform_12, window_bounds = array<i64: 1, 32>}, {pipeline_mode = #tpu.pipeline_mode<synchronous>, transform_indices = @transform_13, window_bounds = array<i64: 1, 32>}, {pipeline_mode = #tpu.pipeline_mode<synchronous>, transform_indices = @transform_14, window_bounds = array<i64: 1, 32>}, {transform_indices = @transform_15, window_bounds = array<i64: 1, 8, 32>}, {transform_indices = @transform_16, window_bounds = array<i64: 4, 1, 8, 8>}]} {
    %c0 = arith.constant 0 : index
    %c0_0 = arith.constant 0 : index
    %c0_1 = arith.constant 0 : index
    %0 = vector.load %arg1[%c0, %c0_0, %c0_1] : memref<1x8x32xf32, #tpu.memory_space<vmem>>, vector<1x8x32xf32>
    %1 = vector.shape_cast %0 : vector<1x8x32xf32> to vector<8x32xf32>
    %c0_2 = arith.constant 0 : index
    %c0_3 = arith.constant 0 : index
    %2 = vector.load %arg2[%c0_2, %c0_3] : memref<32x96xf32, #tpu.memory_space<vmem>>, vector<32x96xf32>
    %cst = arith.constant dense<0.000000e+00> : vector<8x96xf32>
    %3 = tpu.matmul %1, %2, %cst {dimension_numbers = #tpu.dot_dimension_numbers<[1], [0], [0], [1], [0, 0, 1, 1], [], []>} : vector<8x32xf32>, vector<32x96xf32>, vector<8x96xf32> -> vector<8x96xf32>
    %4 = vector.extract_strided_slice %3 {offsets = [0, 0], sizes = [8, 8], strides = [1, 1]} : vector<8x96xf32> to vector<8x8xf32>
    %5 = vector.extract_strided_slice %3 {offsets = [0, 32], sizes = [8, 8], strides = [1, 1]} : vector<8x96xf32> to vector<8x8xf32>
    %6 = vector.extract_strided_slice %3 {offsets = [0, 64], sizes = [8, 8], strides = [1, 1]} : vector<8x96xf32> to vector<8x8xf32>
    %cst_4 = arith.constant dense<0.000000e+00> : vector<8x8xf32>
    %7 = tpu.matmul %4, %5, %cst_4 {dimension_numbers = #tpu.dot_dimension_numbers<[1], [1], [0], [0], [0, 0, 1, 0], [], []>} : vector<8x8xf32>, vector<8x8xf32>, vector<8x8xf32> -> vector<8x8xf32>
    %cst_5 = arith.constant 0.176776692 : f32
    %8 = vector.broadcast %cst_5 : f32 to vector<8x8xf32>
    %9 = arith.mulf %7, %8 : vector<8x8xf32>
    %cst_6 = arith.constant dense<0xFF800000> : vector<8xf32>
    %10 = vector.multi_reduction <maximumf>, %9, %cst_6 [1] : vector<8x8xf32> to vector<8xf32>
    %11 = vector.shape_cast %10 : vector<8xf32> to vector<8x1xf32>
    %12 = vector.broadcast %11 : vector<8x1xf32> to vector<8x8xf32>
    %13 = arith.subf %9, %12 : vector<8x8xf32>
    %14 = math.exp %13 : vector<8x8xf32>
    %cst_7 = arith.constant dense<0.000000e+00> : vector<8xf32>
    %15 = vector.multi_reduction <add>, %14, %cst_7 [1] : vector<8x8xf32> to vector<8xf32>
    %16 = vector.shape_cast %15 : vector<8xf32> to vector<8x1xf32>
    %17 = tpu.reciprocal %16 : vector<8x1xf32> -> vector<8x1xf32>
    %18 = vector.broadcast %17 : vector<8x1xf32> to vector<8x8xf32>
    %19 = arith.mulf %14, %18 : vector<8x8xf32>
    %c0_8 = arith.constant 0 : index
    %c0_9 = arith.constant 0 : index
    %c0_10 = arith.constant 0 : index
    %c0_11 = arith.constant 0 : index
    %20 = vector.load %arg17[%c0_8, %c0_9, %c0_10, %c0_11] : memref<4x1x8x8xf32, #tpu.memory_space<vmem>>, vector<1x1x8x8xf32>
    %21 = vector.shape_cast %20 : vector<1x1x8x8xf32> to vector<8x8xf32>
    %22 = vector.shape_cast %19 : vector<8x8xf32> to vector<1x1x8x8xf32>
    tpu.vector_store %arg17[%c0_8, %c0_9, %c0_10, %c0_11], %22 {strides = array<i32>} : memref<4x1x8x8xf32, #tpu.memory_space<vmem>>, vector<1x1x8x8xf32>,
    %cst_12 = arith.constant dense<0.000000e+00> : vector<8x8xf32>
    %23 = tpu.matmul %19, %6, %cst_12 {dimension_numbers = #tpu.dot_dimension_numbers<[1], [0], [0], [1], [0, 0, 1, 1], [], []>} : vector<8x8xf32>, vector<8x8xf32>, vector<8x8xf32> -> vector<8x8xf32>
    %24 = tpu.transpose %19, [1, 0] : vector<8x8xf32> -> vector<8x8xf32>
    %25 = tpu.concatenate %19, %24 in 1 : vector<8x8xf32>, vector<8x8xf32> -> vector<8x16xf32>
    %26 = vector.extract_strided_slice %3 {offsets = [0, 8], sizes = [8, 8], strides = [1, 1]} : vector<8x96xf32> to vector<8x8xf32>
    %27 = vector.extract_strided_slice %3 {offsets = [0, 40], sizes = [8, 8], strides = [1, 1]} : vector<8x96xf32> to vector<8x8xf32>
    %28 = vector.extract_strided_slice %3 {offsets = [0, 72], sizes = [8, 8], strides = [1, 1]} : vector<8x96xf32> to vector<8x8xf32>
    %cst_13 = arith.constant dense<0.000000e+00> : vector<8x8xf32>
    %29 = tpu.matmul %26, %27, %cst_13 {dimension_numbers = #tpu.dot_dimension_numbers<[1], [1], [0], [0], [0, 0, 1, 0], [], []>} : vector<8x8xf32>, vector<8x8xf32>, vector<8x8xf32> -> vector<8x8xf32>
    %cst_14 = arith.constant 0.176776692 : f32
    %30 = vector.broadcast %cst_14 : f32 to vector<8x8xf32>
    %31 = arith.mulf %29, %30 : vector<8x8xf32>
    %cst_15 = arith.constant dense<0xFF800000> : vector<8xf32>
    %32 = vector.multi_reduction <maximumf>, %31, %cst_15 [1] : vector<8x8xf32> to vector<8xf32>
    %33 = vector.shape_cast %32 : vector<8xf32> to vector<8x1xf32>
    %34 = vector.broadcast %33 : vector<8x1xf32> to vector<8x8xf32>
    %35 = arith.subf %31, %34 : vector<8x8xf32>
    %36 = math.exp %35 : vector<8x8xf32>
    %cst_16 = arith.constant dense<0.000000e+00> : vector<8xf32>
    %37 = vector.multi_reduction <add>, %36, %cst_16 [1] : vector<8x8xf32> to vector<8xf32>
    %38 = vector.shape_cast %37 : vector<8xf32> to vector<8x1xf32>
    %39 = tpu.reciprocal %38 : vector<8x1xf32> -> vector<8x1xf32>
    %40 = vector.broadcast %39 : vector<8x1xf32> to vector<8x8xf32>
    %41 = arith.mulf %36, %40 : vector<8x8xf32>
    %c1 = arith.constant 1 : index
    %c0_17 = arith.constant 0 : index
    %c0_18 = arith.constant 0 : index
    %c0_19 = arith.constant 0 : index
    %42 = vector.load %arg17[%c1, %c0_17, %c0_18, %c0_19] : memref<4x1x8x8xf32, #tpu.memory_space<vmem>>, vector<1x1x8x8xf32>
    %43 = vector.shape_cast %42 : vector<1x1x8x8xf32> to vector<8x8xf32>
    %44 = vector.shape_cast %41 : vector<8x8xf32> to vector<1x1x8x8xf32>
    tpu.vector_store %arg17[%c1, %c0_17, %c0_18, %c0_19], %44 {strides = array<i32>} : memref<4x1x8x8xf32, #tpu.memory_space<vmem>>, vector<1x1x8x8xf32>,
    %cst_20 = arith.constant dense<0.000000e+00> : vector<8x8xf32>
    %45 = tpu.matmul %41, %28, %cst_20 {dimension_numbers = #tpu.dot_dimension_numbers<[1], [0], [0], [1], [0, 0, 1, 1], [], []>} : vector<8x8xf32>, vector<8x8xf32>, vector<8x8xf32> -> vector<8x8xf32>
    %46 = tpu.transpose %41, [1, 0] : vector<8x8xf32> -> vector<8x8xf32>
    %47 = tpu.concatenate %41, %46 in 1 : vector<8x8xf32>, vector<8x8xf32> -> vector<8x16xf32>
    %48 = vector.extract_strided_slice %3 {offsets = [0, 16], sizes = [8, 8], strides = [1, 1]} : vector<8x96xf32> to vector<8x8xf32>
    %49 = vector.extract_strided_slice %3 {offsets = [0, 48], sizes = [8, 8], strides = [1, 1]} : vector<8x96xf32> to vector<8x8xf32>
    %50 = vector.extract_strided_slice %3 {offsets = [0, 80], sizes = [8, 8], strides = [1, 1]} : vector<8x96xf32> to vector<8x8xf32>
    %cst_21 = arith.constant dense<0.000000e+00> : vector<8x8xf32>
    %51 = tpu.matmul %48, %49, %cst_21 {dimension_numbers = #tpu.dot_dimension_numbers<[1], [1], [0], [0], [0, 0, 1, 0], [], []>} : vector<8x8xf32>, vector<8x8xf32>, vector<8x8xf32> -> vector<8x8xf32>
    %cst_22 = arith.constant 0.176776692 : f32
    %52 = vector.broadcast %cst_22 : f32 to vector<8x8xf32>
    %53 = arith.mulf %51, %52 : vector<8x8xf32>
    %cst_23 = arith.constant dense<0xFF800000> : vector<8xf32>
    %54 = vector.multi_reduction <maximumf>, %53, %cst_23 [1] : vector<8x8xf32> to vector<8xf32>
    %55 = vector.shape_cast %54 : vector<8xf32> to vector<8x1xf32>
    %56 = vector.broadcast %55 : vector<8x1xf32> to vector<8x8xf32>
    %57 = arith.subf %53, %56 : vector<8x8xf32>
    %58 = math.exp %57 : vector<8x8xf32>
    %cst_24 = arith.constant dense<0.000000e+00> : vector<8xf32>
    %59 = vector.multi_reduction <add>, %58, %cst_24 [1] : vector<8x8xf32> to vector<8xf32>
    %60 = vector.shape_cast %59 : vector<8xf32> to vector<8x1xf32>
    %61 = tpu.reciprocal %60 : vector<8x1xf32> -> vector<8x1xf32>
    %62 = vector.broadcast %61 : vector<8x1xf32> to vector<8x8xf32>
    %63 = arith.mulf %58, %62 : vector<8x8xf32>
    %c2 = arith.constant 2 : index
    %c0_25 = arith.constant 0 : index
    %c0_26 = arith.constant 0 : index
    %c0_27 = arith.constant 0 : index
    %64 = vector.load %arg17[%c2, %c0_25, %c0_26, %c0_27] : memref<4x1x8x8xf32, #tpu.memory_space<vmem>>, vector<1x1x8x8xf32>
    %65 = vector.shape_cast %64 : vector<1x1x8x8xf32> to vector<8x8xf32>
    %66 = vector.shape_cast %63 : vector<8x8xf32> to vector<1x1x8x8xf32>
    tpu.vector_store %arg17[%c2, %c0_25, %c0_26, %c0_27], %66 {strides = array<i32>} : memref<4x1x8x8xf32, #tpu.memory_space<vmem>>, vector<1x1x8x8xf32>,
    %cst_28 = arith.constant dense<0.000000e+00> : vector<8x8xf32>
    %67 = tpu.matmul %63, %50, %cst_28 {dimension_numbers = #tpu.dot_dimension_numbers<[1], [0], [0], [1], [0, 0, 1, 1], [], []>} : vector<8x8xf32>, vector<8x8xf32>, vector<8x8xf32> -> vector<8x8xf32>
    %68 = tpu.transpose %63, [1, 0] : vector<8x8xf32> -> vector<8x8xf32>
    %69 = tpu.concatenate %63, %68 in 1 : vector<8x8xf32>, vector<8x8xf32> -> vector<8x16xf32>
    %70 = vector.extract_strided_slice %3 {offsets = [0, 24], sizes = [8, 8], strides = [1, 1]} : vector<8x96xf32> to vector<8x8xf32>
    %71 = vector.extract_strided_slice %3 {offsets = [0, 56], sizes = [8, 8], strides = [1, 1]} : vector<8x96xf32> to vector<8x8xf32>
    %72 = vector.extract_strided_slice %3 {offsets = [0, 88], sizes = [8, 8], strides = [1, 1]} : vector<8x96xf32> to vector<8x8xf32>
    %cst_29 = arith.constant dense<0.000000e+00> : vector<8x8xf32>
    %73 = tpu.matmul %70, %71, %cst_29 {dimension_numbers = #tpu.dot_dimension_numbers<[1], [1], [0], [0], [0, 0, 1, 0], [], []>} : vector<8x8xf32>, vector<8x8xf32>, vector<8x8xf32> -> vector<8x8xf32>
    %cst_30 = arith.constant 0.176776692 : f32
    %74 = vector.broadcast %cst_30 : f32 to vector<8x8xf32>
    %75 = arith.mulf %73, %74 : vector<8x8xf32>
    %cst_31 = arith.constant dense<0xFF800000> : vector<8xf32>
    %76 = vector.multi_reduction <maximumf>, %75, %cst_31 [1] : vector<8x8xf32> to vector<8xf32>
    %77 = vector.shape_cast %76 : vector<8xf32> to vector<8x1xf32>
    %78 = vector.broadcast %77 : vector<8x1xf32> to vector<8x8xf32>
    %79 = arith.subf %75, %78 : vector<8x8xf32>
    %80 = math.exp %79 : vector<8x8xf32>
    %cst_32 = arith.constant dense<0.000000e+00> : vector<8xf32>
    %81 = vector.multi_reduction <add>, %80, %cst_32 [1] : vector<8x8xf32> to vector<8xf32>
    %82 = vector.shape_cast %81 : vector<8xf32> to vector<8x1xf32>
    %83 = tpu.reciprocal %82 : vector<8x1xf32> -> vector<8x1xf32>
    %84 = vector.broadcast %83 : vector<8x1xf32> to vector<8x8xf32>
    %85 = arith.mulf %80, %84 : vector<8x8xf32>
    %c3 = arith.constant 3 : index
    %c0_33 = arith.constant 0 : index
    %c0_34 = arith.constant 0 : index
    %c0_35 = arith.constant 0 : index
    %86 = vector.load %arg17[%c3, %c0_33, %c0_34, %c0_35] : memref<4x1x8x8xf32, #tpu.memory_space<vmem>>, vector<1x1x8x8xf32>
    %87 = vector.shape_cast %86 : vector<1x1x8x8xf32> to vector<8x8xf32>
    %88 = vector.shape_cast %85 : vector<8x8xf32> to vector<1x1x8x8xf32>
    tpu.vector_store %arg17[%c3, %c0_33, %c0_34, %c0_35], %88 {strides = array<i32>} : memref<4x1x8x8xf32, #tpu.memory_space<vmem>>, vector<1x1x8x8xf32>,
    %cst_36 = arith.constant dense<0.000000e+00> : vector<8x8xf32>
    %89 = tpu.matmul %85, %72, %cst_36 {dimension_numbers = #tpu.dot_dimension_numbers<[1], [0], [0], [1], [0, 0, 1, 1], [], []>} : vector<8x8xf32>, vector<8x8xf32>, vector<8x8xf32> -> vector<8x8xf32>
    %90 = tpu.transpose %85, [1, 0] : vector<8x8xf32> -> vector<8x8xf32>
    %91 = tpu.concatenate %85, %90 in 1 : vector<8x8xf32>, vector<8x8xf32> -> vector<8x16xf32>
    %92 = tpu.concatenate %23, %45, %67, %89 in 1 : vector<8x8xf32>, vector<8x8xf32>, vector<8x8xf32>, vector<8x8xf32> -> vector<8x32xf32>
    %c0_37 = arith.constant 0 : index
    %c0_38 = arith.constant 0 : index
    %93 = vector.load %arg3[%c0_37, %c0_38] : memref<32x32xf32, #tpu.memory_space<vmem>>, vector<32x32xf32>
    %cst_39 = arith.constant dense<0.000000e+00> : vector<8x32xf32>
    %94 = tpu.matmul %92, %93, %cst_39 {dimension_numbers = #tpu.dot_dimension_numbers<[1], [0], [0], [1], [0, 0, 1, 1], [], []>} : vector<8x32xf32>, vector<32x32xf32>, vector<8x32xf32> -> vector<8x32xf32>
    %c0_40 = arith.constant 0 : index
    %c0_41 = arith.constant 0 : index
    %95 = vector.load %arg4[%c0_40, %c0_41] : memref<1x32xf32, #tpu.memory_space<vmem>>, vector<1x32xf32>
    %96 = vector.broadcast %95 : vector<1x32xf32> to vector<8x32xf32>
    %97 = arith.addf %94, %96 : vector<8x32xf32>
    %98 = arith.addf %97, %1 : vector<8x32xf32>
    %c0_42 = arith.constant 0 : index
    %c0_43 = arith.constant 0 : index
    %99 = vector.load %arg5[%c0_42, %c0_43] : memref<1x32xf32, #tpu.memory_space<vmem>>, vector<1x32xf32>
    %c0_44 = arith.constant 0 : index
    %c0_45 = arith.constant 0 : index
    %100 = vector.load %arg6[%c0_44, %c0_45] : memref<1x32xf32, #tpu.memory_space<vmem>>, vector<1x32xf32>
    %cst_46 = arith.constant dense<0.000000e+00> : vector<8xf32>
    %101 = vector.multi_reduction <add>, %98, %cst_46 [1] : vector<8x32xf32> to vector<8xf32>
    %102 = vector.shape_cast %101 : vector<8xf32> to vector<8x1xf32>
    %cst_47 = arith.constant 3.200000e+01 : f32
    %103 = vector.broadcast %cst_47 : f32 to vector<8x1xf32>
    %104 = arith.divf %102, %103 : vector<8x1xf32>
    %105 = vector.broadcast %104 : vector<8x1xf32> to vector<8x32xf32>
    %106 = arith.subf %98, %105 : vector<8x32xf32>
    %107 = arith.mulf %106, %106 : vector<8x32xf32>
    %cst_48 = arith.constant dense<0.000000e+00> : vector<8xf32>
    %108 = vector.multi_reduction <add>, %107, %cst_48 [1] : vector<8x32xf32> to vector<8xf32>
    %109 = vector.shape_cast %108 : vector<8xf32> to vector<8x1xf32>
    %cst_49 = arith.constant 3.100000e+01 : f32
    %110 = vector.broadcast %cst_49 : f32 to vector<8x1xf32>
    %111 = arith.divf %109, %110 : vector<8x1xf32>
    %112 = math.sqrt %111 : vector<8x1xf32>
    %113 = vector.broadcast %104 : vector<8x1xf32> to vector<8x32xf32>
    %114 = arith.subf %98, %113 : vector<8x32xf32>
    %cst_50 = arith.constant 1.000000e-03 : f32
    %115 = vector.broadcast %cst_50 : f32 to vector<8x1xf32>
    %116 = arith.addf %112, %115 : vector<8x1xf32>
    %117 = tpu.reciprocal %116 : vector<8x1xf32> -> vector<8x1xf32>
    %118 = vector.broadcast %117 : vector<8x1xf32> to vector<8x32xf32>
    %119 = arith.mulf %114, %118 : vector<8x32xf32>
    %120 = vector.broadcast %99 : vector<1x32xf32> to vector<8x32xf32>
    %121 = arith.mulf %119, %120 : vector<8x32xf32>
    %122 = vector.broadcast %100 : vector<1x32xf32> to vector<8x32xf32>
    %123 = arith.addf %121, %122 : vector<8x32xf32>
    %124 = tpu.concatenate %25, %47, %69, %91 in 1 : vector<8x16xf32>, vector<8x16xf32>, vector<8x16xf32>, vector<8x16xf32> -> vector<8x64xf32>
    %c0_51 = arith.constant 0 : index
    %c0_52 = arith.constant 0 : index
    %125 = vector.load %arg7[%c0_51, %c0_52] : memref<64x32xf32, #tpu.memory_space<vmem>>, vector<64x32xf32>
    %cst_53 = arith.constant dense<0.000000e+00> : vector<8x32xf32>
    %126 = tpu.matmul %124, %125, %cst_53 {dimension_numbers = #tpu.dot_dimension_numbers<[1], [0], [0], [1], [0, 0, 1, 1], [], []>} : vector<8x64xf32>, vector<64x32xf32>, vector<8x32xf32> -> vector<8x32xf32>
    %c0_54 = arith.constant 0 : index
    %c0_55 = arith.constant 0 : index
    %127 = vector.load %arg8[%c0_54, %c0_55] : memref<32x32xf32, #tpu.memory_space<vmem>>, vector<32x32xf32>
    %cst_56 = arith.constant dense<0.000000e+00> : vector<8x32xf32>
    %128 = tpu.matmul %123, %127, %cst_56 {dimension_numbers = #tpu.dot_dimension_numbers<[1], [0], [0], [1], [0, 0, 1, 1], [], []>} : vector<8x32xf32>, vector<32x32xf32>, vector<8x32xf32> -> vector<8x32xf32>
    %129 = arith.addf %126, %128 : vector<8x32xf32>
    %c0_57 = arith.constant 0 : index
    %c0_58 = arith.constant 0 : index
    %130 = vector.load %arg9[%c0_57, %c0_58] : memref<1x32xf32, #tpu.memory_space<vmem>>, vector<1x32xf32>
    %131 = vector.broadcast %130 : vector<1x32xf32> to vector<8x32xf32>
    %132 = arith.addf %129, %131 : vector<8x32xf32>
    %c0_59 = arith.constant 0 : index
    %c0_60 = arith.constant 0 : index
    %133 = vector.load %arg10[%c0_59, %c0_60] : memref<32x64xf32, #tpu.memory_space<vmem>>, vector<32x64xf32>
    %cst_61 = arith.constant dense<0.000000e+00> : vector<8x64xf32>
    %134 = tpu.matmul %132, %133, %cst_61 {dimension_numbers = #tpu.dot_dimension_numbers<[1], [0], [0], [1], [0, 0, 1, 1], [], []>} : vector<8x32xf32>, vector<32x64xf32>, vector<8x64xf32> -> vector<8x64xf32>
    %c0_62 = arith.constant 0 : index
    %c0_63 = arith.constant 0 : index
    %135 = vector.load %arg11[%c0_62, %c0_63] : memref<1x64xf32, #tpu.memory_space<vmem>>, vector<1x64xf32>
    %136 = vector.broadcast %135 : vector<1x64xf32> to vector<8x64xf32>
    %137 = arith.addf %134, %136 : vector<8x64xf32>
    %cst_64 = arith.constant 0.000000e+00 : f32
    %138 = vector.broadcast %cst_64 : f32 to vector<8x64xf32>
    %139 = arith.maximumf %137, %138 : vector<8x64xf32>
    %c0_65 = arith.constant 0 : index
    %c0_66 = arith.constant 0 : index
    %140 = vector.load %arg12[%c0_65, %c0_66] : memref<64x32xf32, #tpu.memory_space<vmem>>, vector<64x32xf32>
    %cst_67 = arith.constant dense<0.000000e+00> : vector<8x32xf32>
    %141 = tpu.matmul %139, %140, %cst_67 {dimension_numbers = #tpu.dot_dimension_numbers<[1], [0], [0], [1], [0, 0, 1, 1], [], []>} : vector<8x64xf32>, vector<64x32xf32>, vector<8x32xf32> -> vector<8x32xf32>
    %c0_68 = arith.constant 0 : index
    %c0_69 = arith.constant 0 : index
    %142 = vector.load %arg13[%c0_68, %c0_69] : memref<1x32xf32, #tpu.memory_space<vmem>>, vector<1x32xf32>
    %143 = vector.broadcast %142 : vector<1x32xf32> to vector<8x32xf32>
    %144 = arith.addf %141, %143 : vector<8x32xf32>
    %145 = arith.addf %144, %132 : vector<8x32xf32>
    %c0_70 = arith.constant 0 : index
    %c0_71 = arith.constant 0 : index
    %146 = vector.load %arg14[%c0_70, %c0_71] : memref<1x32xf32, #tpu.memory_space<vmem>>, vector<1x32xf32>
    %c0_72 = arith.constant 0 : index
    %c0_73 = arith.constant 0 : index
    %147 = vector.load %arg15[%c0_72, %c0_73] : memref<1x32xf32, #tpu.memory_space<vmem>>, vector<1x32xf32>
    %cst_74 = arith.constant dense<0.000000e+00> : vector<8xf32>
    %148 = vector.multi_reduction <add>, %145, %cst_74 [1] : vector<8x32xf32> to vector<8xf32>
    %149 = vector.shape_cast %148 : vector<8xf32> to vector<8x1xf32>
    %cst_75 = arith.constant 3.200000e+01 : f32
    %150 = vector.broadcast %cst_75 : f32 to vector<8x1xf32>
    %151 = arith.divf %149, %150 : vector<8x1xf32>
    %152 = vector.broadcast %151 : vector<8x1xf32> to vector<8x32xf32>
    %153 = arith.subf %145, %152 : vector<8x32xf32>
    %154 = arith.mulf %153, %153 : vector<8x32xf32>
    %cst_76 = arith.constant dense<0.000000e+00> : vector<8xf32>
    %155 = vector.multi_reduction <add>, %154, %cst_76 [1] : vector<8x32xf32> to vector<8xf32>
    %156 = vector.shape_cast %155 : vector<8xf32> to vector<8x1xf32>
    %cst_77 = arith.constant 3.100000e+01 : f32
    %157 = vector.broadcast %cst_77 : f32 to vector<8x1xf32>
    %158 = arith.divf %156, %157 : vector<8x1xf32>
    %159 = math.sqrt %158 : vector<8x1xf32>
    %160 = vector.broadcast %151 : vector<8x1xf32> to vector<8x32xf32>
    %161 = arith.subf %145, %160 : vector<8x32xf32>
    %cst_78 = arith.constant 1.000000e-03 : f32
    %162 = vector.broadcast %cst_78 : f32 to vector<8x1xf32>
    %163 = arith.addf %159, %162 : vector<8x1xf32>
    %164 = tpu.reciprocal %163 : vector<8x1xf32> -> vector<8x1xf32>
    %165 = vector.broadcast %164 : vector<8x1xf32> to vector<8x32xf32>
    %166 = arith.mulf %161, %165 : vector<8x32xf32>
    %167 = vector.broadcast %146 : vector<1x32xf32> to vector<8x32xf32>
    %168 = arith.mulf %166, %167 : vector<8x32xf32>
    %169 = vector.broadcast %147 : vector<1x32xf32> to vector<8x32xf32>
    %170 = arith.addf %168, %169 : vector<8x32xf32>
    %c0_79 = arith.constant 0 : index
    %c0_80 = arith.constant 0 : index
    %c0_81 = arith.constant 0 : index
    %171 = vector.load %arg16[%c0_79, %c0_80, %c0_81] : memref<1x8x32xf32, #tpu.memory_space<vmem>>, vector<1x8x32xf32>
    %172 = vector.shape_cast %171 : vector<1x8x32xf32> to vector<8x32xf32>
    %173 = vector.shape_cast %170 : vector<8x32xf32> to vector<1x8x32xf32>
    tpu.vector_store %arg16[%c0_79, %c0_80, %c0_81], %173 {strides = array<i32>} : memref<1x8x32xf32, #tpu.memory_space<vmem>>, vector<1x8x32xf32>,
    return
  }
  func.func @transform_0(%arg0: i32) -> (i32, i32, i32) {
    %c0_i32 = arith.constant 0 : i32
    %c0_i32_0 = arith.constant 0 : i32
    %c0_i32_1 = arith.constant 0 : i32
    return %arg0, %c0_i32, %c0_i32_0 : i32, i32, i32
  }
  func.func @transform_1(%arg0: i32) -> (i32, i32) {
    %c0_i32 = arith.constant 0 : i32
    %c0_i32_0 = arith.constant 0 : i32
    %c0_i32_1 = arith.constant 0 : i32
    return %c0_i32, %c0_i32_0 : i32, i32
  }
  func.func @transform_2(%arg0: i32) -> (i32, i32) {
    %c0_i32 = arith.constant 0 : i32
    %c0_i32_0 = arith.constant 0 : i32
    %c0_i32_1 = arith.constant 0 : i32
    return %c0_i32, %c0_i32_0 : i32, i32
  }
  func.func @transform_3(%arg0: i32) -> (i32, i32) {
    %c0_i32 = arith.constant 0 : i32
    %c0_i32_0 = arith.constant 0 : i32
    %c0_i32_1 = arith.constant 0 : i32
    return %c0_i32, %c0_i32_0 : i32, i32
  }
  func.func @transform_4(%arg0: i32) -> (i32, i32) {
    %c0_i32 = arith.constant 0 : i32
    %c0_i32_0 = arith.constant 0 : i32
    %c0_i32_1 = arith.constant 0 : i32
    return %c0_i32, %c0_i32_0 : i32, i32
  }
  func.func @transform_5(%arg0: i32) -> (i32, i32) {
    %c0_i32 = arith.constant 0 : i32
    %c0_i32_0 = arith.constant 0 : i32
    %c0_i32_1 = arith.constant 0 : i32
    return %c0_i32, %c0_i32_0 : i32, i32
  }
  func.func @transform_6(%arg0: i32) -> (i32, i32) {
    %c0_i32 = arith.constant 0 : i32
    %c0_i32_0 = arith.constant 0 : i32
    %c0_i32_1 = arith.constant 0 : i32
    return %c0_i32, %c0_i32_0 : i32, i32
  }
  func.func @transform_7(%arg0: i32) -> (i32, i32) {
    %c0_i32 = arith.constant 0 : i32
    %c0_i32_0 = arith.constant 0 : i32
    %c0_i32_1 = arith.constant 0 : i32
    return %c0_i32, %c0_i32_0 : i32, i32
  }
  func.func @transform_8(%arg0: i32) -> (i32, i32) {
    %c0_i32 = arith.constant 0 : i32
    %c0_i32_0 = arith.constant 0 : i32
    %c0_i32_1 = arith.constant 0 : i32
    return %c0_i32, %c0_i32_0 : i32, i32
  }
  func.func @transform_9(%arg0: i32) -> (i32, i32) {
    %c0_i32 = arith.constant 0 : i32
    %c0_i32_0 = arith.constant 0 : i32
    %c0_i32_1 = arith.constant 0 : i32
    return %c0_i32, %c0_i32_0 : i32, i32
  }
  func.func @transform_10(%arg0: i32) -> (i32, i32) {
    %c0_i32 = arith.constant 0 : i32
    %c0_i32_0 = arith.constant 0 : i32
    %c0_i32_1 = arith.constant 0 : i32
    return %c0_i32, %c0_i32_0 : i32, i32
  }
  func.func @transform_11(%arg0: i32) -> (i32, i32) {
    %c0_i32 = arith.constant 0 : i32
    %c0_i32_0 = arith.constant 0 : i32
    %c0_i32_1 = arith.constant 0 : i32
    return %c0_i32, %c0_i32_0 : i32, i32
  }
  func.func @transform_12(%arg0: i32) -> (i32, i32) {
    %c0_i32 = arith.constant 0 : i32
    %c0_i32_0 = arith.constant 0 : i32
    %c0_i32_1 = arith.constant 0 : i32
    return %c0_i32, %c0_i32_0 : i32, i32
  }
  func.func @transform_13(%arg0: i32) -> (i32, i32) {
    %c0_i32 = arith.constant 0 : i32
    %c0_i32_0 = arith.constant 0 : i32
    %c0_i32_1 = arith.constant 0 : i32
    return %c0_i32, %c0_i32_0 : i32, i32
  }
  func.func @transform_14(%arg0: i32) -> (i32, i32) {
    %c0_i32 = arith.constant 0 : i32
    %c0_i32_0 = arith.constant 0 : i32
    %c0_i32_1 = arith.constant 0 : i32
    return %c0_i32, %c0_i32_0 : i32, i32
  }
  func.func @transform_15(%arg0: i32) -> (i32, i32, i32) {
    %c0_i32 = arith.constant 0 : i32
    %c0_i32_0 = arith.constant 0 : i32
    %c0_i32_1 = arith.constant 0 : i32
    return %arg0, %c0_i32, %c0_i32_0 : i32, i32, i32
  }
  func.func @transform_16(%arg0: i32) -> (i32, i32, i32, i32) {
    %c0_i32 = arith.constant 0 : i32
    %c0_i32_0 = arith.constant 0 : i32
    %c0_i32_1 = arith.constant 0 : i32
    %c0_i32_2 = arith.constant 0 : i32
    return %c0_i32, %arg0, %c0_i32_0, %c0_i32_1 : i32, i32, i32, i32
  }
}

</mosaic_0001>

<llo_original>
// kernel: tpu_custom_call.1
$region0: #{tpu_custom_call.1}
  #allocation0 [shape = 'u32[]', space=smem, size = 0x4, offset = 0x4, fixed_abs, tag = 'smem constant byte address 0x4 - core index']
  #allocation1 [shape = 'u32[144,128]{1,0:T(1,128)}', space=vmem, size = 0x12000, scoped, tag = 'internal scratch']
  %s0 = inlined_call_operand.vmem [shape: f32[2,8,32], index: 0, kind: input, shape index: {}]
  %s1 = inlined_call_operand.vmem [shape: f32[32,96], index: 1, kind: input, shape index: {}]
  %s2 = inlined_call_operand.vmem [shape: f32[32,32], index: 2, kind: input, shape index: {}]
  %s3 = inlined_call_operand.vmem [shape: f32[1,32], index: 3, kind: input, shape index: {}]
  %s4 = inlined_call_operand.vmem [shape: f32[1,32], index: 4, kind: input, shape index: {}]
  %s5 = inlined_call_operand.vmem [shape: f32[1,32], index: 5, kind: input, shape index: {}]
  %s6 = inlined_call_operand.vmem [shape: f32[64,32], index: 6, kind: input, shape index: {}]
  %s7 = inlined_call_operand.vmem [shape: f32[32,32], index: 7, kind: input, shape index: {}]
  %s8 = inlined_call_operand.vmem [shape: f32[1,32], index: 8, kind: input, shape index: {}]
  %s9 = inlined_call_operand.vmem [shape: f32[32,64], index: 9, kind: input, shape index: {}]
  %s10 = inlined_call_operand.vmem [shape: f32[1,64], index: 10, kind: input, shape index: {}]
  %s11 = inlined_call_operand.vmem [shape: f32[64,32], index: 11, kind: input, shape index: {}]
  %s12 = inlined_call_operand.vmem [shape: f32[1,32], index: 12, kind: input, shape index: {}]
  %s13 = inlined_call_operand.vmem [shape: f32[1,32], index: 13, kind: input, shape index: {}]
  %s14 = inlined_call_operand.vmem [shape: f32[1,32], index: 14, kind: input, shape index: {}]
  %s15 = inlined_call_operand.hbm [shape: f32[2,8,32], index: 15, kind: output, shape index: {0}]
  %s16 = inlined_call_operand.hbm [shape: f32[4,2,8,8], index: 16, kind: output, shape index: {1}]
  %17 = xla_tuple %s15, %s16
  %s18 = sld [smem:[#allocation0]]
  $region101: #{tpu_custom_call.1} parent=0
    _
  %s20 = ssub.s32 1, %s18
  %s21 = scalar_select 0, %s20, %s18
  $region1: #{tpu_custom_call.1} parent=0
    #allocation2 [shape = 'u8[8192]{0}', space=vmem, size = 0x2000, scoped, tag = 'output window, operand 0']
    #allocation3 [shape = 's32[2]{0}', space=sflag, size = 0x8, scoped, tag = 'scoped memory for tpu_custom_call.1']
    #allocation4 [shape = 'u8[32768]{0}', space=vmem, size = 0x8000, scoped, tag = 'output window, operand 1']
    #allocation5 [shape = 's32[2]{0}', space=sflag, size = 0x8, scoped, tag = 'scoped memory for tpu_custom_call.1']
    %22 = vsyncpa [#allocation3], 0
    %s23 = scalar_lea.sflag [#allocation3], 1
    %24 = vsyncpa %s23, 0
    %25 = vsyncpa [#allocation5], 0
    %s26 = scalar_lea.sflag [#allocation5], 1
    %27 = vsyncpa %s26, 0
    loop: start=0, step=1, limit=4
    $region2: #{tpu_custom_call.1} parent=1 // loop_pre_header
      _
    $region3: #{tpu_custom_call.1} parent=1 // loop_header
      %s29 = sphi 0, %s33
      %p30 = scmp.ge.s32.totalorder %s29, 4
      %s39 = sphi 0, %s41
      %s42 = sphi 0, %s39
      %s43 = sphi 0, %s42
      %s59 = sphi 0, %s43
      %s63 = sphi 0, %s63
      %s65 = sphi 0, %s63
      %s66 = sphi 0, %s65
      %s80 = sphi 0, %s66
      %s84 = sphi 0, %s84
      %s86 = sphi 0, %s84
      %s87 = sphi 0, %s86
      %s101 = sphi 0, %s87
      %s105 = sphi 0, %s105
      %s107 = sphi 0, %s105
      %s108 = sphi 0, %s107
      %s122 = sphi 0, %s108
      %s126 = sphi 0, %s126
      %s128 = sphi 0, %s126
      %s129 = sphi 0, %s128
      %s143 = sphi 0, %s129
      %s147 = sphi 0, %s147
      %s149 = sphi 0, %s147
      %s150 = sphi 0, %s149
      %s164 = sphi 0, %s150
      %s168 = sphi 0, %s168
      %s170 = sphi 0, %s168
      %s171 = sphi 0, %s170
      %s185 = sphi 0, %s171
      %s189 = sphi 0, %s189
      %s191 = sphi 0, %s189
      %s192 = sphi 0, %s191
      %s206 = sphi 0, %s192
      %s210 = sphi 0, %s210
      %s212 = sphi 0, %s210
      %s213 = sphi 0, %s212
      %s227 = sphi 0, %s213
      %s231 = sphi 0, %s231
      %s233 = sphi 0, %s231
      %s234 = sphi 0, %s233
      %s248 = sphi 0, %s234
      %s252 = sphi 0, %s252
      %s254 = sphi 0, %s252
      %s255 = sphi 0, %s254
      %s269 = sphi 0, %s255
      %s273 = sphi 0, %s273
      %s275 = sphi 0, %s273
      %s276 = sphi 0, %s275
      %s290 = sphi 0, %s276
      %s294 = sphi 0, %s294
      %s296 = sphi 0, %s294
      %s297 = sphi 0, %s296
      %s311 = sphi 0, %s297
      %s315 = sphi 0, %s315
      %s317 = sphi 0, %s315
      %s318 = sphi 0, %s317
      %s332 = sphi 0, %s318
      %s336 = sphi 0, %s336
      %s338 = sphi 0, %s336
      %s339 = sphi 0, %s338
      %s353 = sphi 0, %s339
      %s359 = sphi 0, %s361
      %s362 = sphi 0, %s359
      %s363 = sphi 0, %s362
      %s379 = sphi 0, %s363
      %s385 = sphi 0, %s387
      %s388 = sphi 0, %s385
      %s389 = sphi 0, %s388
      %s405 = sphi 0, %s389
    $region4: #{tpu_custom_call.1} parent=1 // loop_header_branch
      %32 = sbr.rel (%p30) target = $region8
    $region5: #{tpu_custom_call.1} parent=1 // loop_body
      %s34 = ssub.s32 %s29, 1
      %s35 = ssub.s32 %s29, 2
      %s36 = sadd.s32 %s29, 1
      %s37 = ssub.s32 %s29, %s36
      %p38 = scmp.eq.s32.totalorder %s37, 0
      %s40 = sadd.s32 %s39, 1
      %s41 = scalar_select %p38, %s39, %s40
      %p44 = pneg %p38
      %p45 = scmp.eq.s32.totalorder %s29, 1
      %p46 = por %p44, %p45
      %p47 = scmp.ne.s32.totalorder %s39, %s42
      %p48 = scmp.eq.s32.totalorder %s29, 0
      %p49 = por %p47, %p48
      %p50 = scmp.ne.s32.totalorder %s39, %s42
      %p51 = scmp.eq.s32.totalorder %s34, 1
      %p52 = por %p50, %p51
      %p53 = scmp.ne.s32.totalorder %s42, %s43
      %p54 = scmp.eq.s32.totalorder %s34, 0
      %p55 = por %p53, %p54
      %p56 = scmp.ne.s32.totalorder %s42, %s43
      %p57 = scmp.eq.s32.totalorder %s35, 1
      %p58 = por %p56, %p57
      %p60 = scmp.ne.s32.totalorder %s43, %s59
      %p61 = scmp.eq.s32.totalorder %s35, 0
      %p62 = por %p60, %p61
      %s64 = sadd.s32 %s63, 1
      %p67 = scmp.eq.s32.totalorder %s29, 1
      %p68 = scmp.ne.s32.totalorder %s63, %s65
      %p69 = scmp.eq.s32.totalorder %s29, 0
      %p70 = por %p68, %p69
      %p71 = scmp.ne.s32.totalorder %s63, %s65
      %p72 = scmp.eq.s32.totalorder %s34, 1
      %p73 = por %p71, %p72
      %p74 = scmp.ne.s32.totalorder %s65, %s66
      %p75 = scmp.eq.s32.totalorder %s34, 0
      %p76 = por %p74, %p75
      %p77 = scmp.ne.s32.totalorder %s65, %s66
      %p78 = scmp.eq.s32.totalorder %s35, 1
      %p79 = por %p77, %p78
      %p81 = scmp.ne.s32.totalorder %s66, %s80
      %p82 = scmp.eq.s32.totalorder %s35, 0
      %p83 = por %p81, %p82
      %s85 = sadd.s32 %s84, 1
      %p88 = scmp.eq.s32.totalorder %s29, 1
      %p89 = scmp.ne.s32.totalorder %s84, %s86
      %p90 = scmp.eq.s32.totalorder %s29, 0
      %p91 = por %p89, %p90
      %p92 = scmp.ne.s32.totalorder %s84, %s86
      %p93 = scmp.eq.s32.totalorder %s34, 1
      %p94 = por %p92, %p93
      %p95 = scmp.ne.s32.totalorder %s86, %s87
      %p96 = scmp.eq.s32.totalorder %s34, 0
      %p97 = por %p95, %p96
      %p98 = scmp.ne.s32.totalorder %s86, %s87
      %p99 = scmp.eq.s32.totalorder %s35, 1
      %p100 = por %p98, %p99
      %p102 = scmp.ne.s32.totalorder %s87, %s101
      %p103 = scmp.eq.s32.totalorder %s35, 0
      %p104 = por %p102, %p103
      %s106 = sadd.s32 %s105, 1
      %p109 = scmp.eq.s32.totalorder %s29, 1
      %p110 = scmp.ne.s32.totalorder %s105, %s107
      %p111 = scmp.eq.s32.totalorder %s29, 0
      %p112 = por %p110, %p111
      %p113 = scmp.ne.s32.totalorder %s105, %s107
      %p114 = scmp.eq.s32.totalorder %s34, 1
      %p115 = por %p113, %p114
      %p116 = scmp.ne.s32.totalorder %s107, %s108
      %p117 = scmp.eq.s32.totalorder %s34, 0
      %p118 = por %p116, %p117
      %p119 = scmp.ne.s32.totalorder %s107, %s108
      %p120 = scmp.eq.s32.totalorder %s35, 1
      %p121 = por %p119, %p120
      %p123 = scmp.ne.s32.totalorder %s108, %s122
      %p124 = scmp.eq.s32.totalorder %s35, 0
      %p125 = por %p123, %p124
      %s127 = sadd.s32 %s126, 1
      %p130 = scmp.eq.s32.totalorder %s29, 1
      %p131 = scmp.ne.s32.totalorder %s126, %s128
      %p132 = scmp.eq.s32.totalorder %s29, 0
      %p133 = por %p131, %p132
      %p134 = scmp.ne.s32.totalorder %s126, %s128
      %p135 = scmp.eq.s32.totalorder %s34, 1
      %p136 = por %p134, %p135
      %p137 = scmp.ne.s32.totalorder %s128, %s129
      %p138 = scmp.eq.s32.totalorder %s34, 0
      %p139 = por %p137, %p138
      %p140 = scmp.ne.s32.totalorder %s128, %s129
      %p141 = scmp.eq.s32.totalorder %s35, 1
      %p142 = por %p140, %p141
      %p144 = scmp.ne.s32.totalorder %s129, %s143
      %p145 = scmp.eq.s32.totalorder %s35, 0
      %p146 = por %p144, %p145
      %s148 = sadd.s32 %s147, 1
      %p151 = scmp.eq.s32.totalorder %s29, 1
      %p152 = scmp.ne.s32.totalorder %s147, %s149
      %p153 = scmp.eq.s32.totalorder %s29, 0
      %p154 = por %p152, %p153
      %p155 = scmp.ne.s32.totalorder %s147, %s149
      %p156 = scmp.eq.s32.totalorder %s34, 1
      %p157 = por %p155, %p156
      %p158 = scmp.ne.s32.totalorder %s149, %s150
      %p159 = scmp.eq.s32.totalorder %s34, 0
      %p160 = por %p158, %p159
      %p161 = scmp.ne.s32.totalorder %s149, %s150
      %p162 = scmp.eq.s32.totalorder %s35, 1
      %p163 = por %p161, %p162
      %p165 = scmp.ne.s32.totalorder %s150, %s164
      %p166 = scmp.eq.s32.totalorder %s35, 0
      %p167 = por %p165, %p166
      %s169 = sadd.s32 %s168, 1
      %p172 = scmp.eq.s32.totalorder %s29, 1
      %p173 = scmp.ne.s32.totalorder %s168, %s170
      %p174 = scmp.eq.s32.totalorder %s29, 0
      %p175 = por %p173, %p174
      %p176 = scmp.ne.s32.totalorder %s168, %s170
      %p177 = scmp.eq.s32.totalorder %s34, 1
      %p178 = por %p176, %p177
      %p179 = scmp.ne.s32.totalorder %s170, %s171
      %p180 = scmp.eq.s32.totalorder %s34, 0
      %p181 = por %p179, %p180
      %p182 = scmp.ne.s32.totalorder %s170, %s171
      %p183 = scmp.eq.s32.totalorder %s35, 1
      %p184 = por %p182, %p183
      %p186 = scmp.ne.s32.totalorder %s171, %s185
      %p187 = scmp.eq.s32.totalorder %s35, 0
      %p188 = por %p186, %p187
      %s190 = sadd.s32 %s189, 1
      %p193 = scmp.eq.s32.totalorder %s29, 1
      %p194 = scmp.ne.s32.totalorder %s189, %s191
      %p195 = scmp.eq.s32.totalorder %s29, 0
      %p196 = por %p194, %p195
      %p197 = scmp.ne.s32.totalorder %s189, %s191
      %p198 = scmp.eq.s32.totalorder %s34, 1
      %p199 = por %p197, %p198
      %p200 = scmp.ne.s32.totalorder %s191, %s192
      %p201 = scmp.eq.s32.totalorder %s34, 0
      %p202 = por %p200, %p201
      %p203 = scmp.ne.s32.totalorder %s191, %s192
      %p204 = scmp.eq.s32.totalorder %s35, 1
      %p205 = por %p203, %p204
      %p207 = scmp.ne.s32.totalorder %s192, %s206
      %p208 = scmp.eq.s32.totalorder %s35, 0
      %p209 = por %p207, %p208
      %s211 = sadd.s32 %s210, 1
      %p214 = scmp.eq.s32.totalorder %s29, 1
      %p215 = scmp.ne.s32.totalorder %s210, %s212
      %p216 = scmp.eq.s32.totalorder %s29, 0
      %p217 = por %p215, %p216
      %p218 = scmp.ne.s32.totalorder %s210, %s212
      %p219 = scmp.eq.s32.totalorder %s34, 1
      %p220 = por %p218, %p219
      %p221 = scmp.ne.s32.totalorder %s212, %s213
      %p222 = scmp.eq.s32.totalorder %s34, 0
      %p223 = por %p221, %p222
      %p224 = scmp.ne.s32.totalorder %s212, %s213
      %p225 = scmp.eq.s32.totalorder %s35, 1
      %p226 = por %p224, %p225
      %p228 = scmp.ne.s32.totalorder %s213, %s227
      %p229 = scmp.eq.s32.totalorder %s35, 0
      %p230 = por %p228, %p229
      %s232 = sadd.s32 %s231, 1
      %p235 = scmp.eq.s32.totalorder %s29, 1
      %p236 = scmp.ne.s32.totalorder %s231, %s233
      %p237 = scmp.eq.s32.totalorder %s29, 0
      %p238 = por %p236, %p237
      %p239 = scmp.ne.s32.totalorder %s231, %s233
      %p240 = scmp.eq.s32.totalorder %s34, 1
      %p241 = por %p239, %p240
      %p242 = scmp.ne.s32.totalorder %s233, %s234
      %p243 = scmp.eq.s32.totalorder %s34, 0
      %p244 = por %p242, %p243
      %p245 = scmp.ne.s32.totalorder %s233, %s234
      %p246 = scmp.eq.s32.totalorder %s35, 1
      %p247 = por %p245, %p246
      %p249 = scmp.ne.s32.totalorder %s234, %s248
      %p250 = scmp.eq.s32.totalorder %s35, 0
      %p251 = por %p249, %p250
      %s253 = sadd.s32 %s252, 1
      %p256 = scmp.eq.s32.totalorder %s29, 1
      %p257 = scmp.ne.s32.totalorder %s252, %s254
      %p258 = scmp.eq.s32.totalorder %s29, 0
      %p259 = por %p257, %p258
      %p260 = scmp.ne.s32.totalorder %s252, %s254
      %p261 = scmp.eq.s32.totalorder %s34, 1
      %p262 = por %p260, %p261
      %p263 = scmp.ne.s32.totalorder %s254, %s255
      %p264 = scmp.eq.s32.totalorder %s34, 0
      %p265 = por %p263, %p264
      %p266 = scmp.ne.s32.totalorder %s254, %s255
      %p267 = scmp.eq.s32.totalorder %s35, 1
      %p268 = por %p266, %p267
      %p270 = scmp.ne.s32.totalorder %s255, %s269
      %p271 = scmp.eq.s32.totalorder %s35, 0
      %p272 = por %p270, %p271
      %s274 = sadd.s32 %s273, 1
      %p277 = scmp.eq.s32.totalorder %s29, 1
      %p278 = scmp.ne.s32.totalorder %s273, %s275
      %p279 = scmp.eq.s32.totalorder %s29, 0
      %p280 = por %p278, %p279
      %p281 = scmp.ne.s32.totalorder %s273, %s275
      %p282 = scmp.eq.s32.totalorder %s34, 1
      %p283 = por %p281, %p282
      %p284 = scmp.ne.s32.totalorder %s275, %s276
      %p285 = scmp.eq.s32.totalorder %s34, 0
      %p286 = por %p284, %p285
      %p287 = scmp.ne.s32.totalorder %s275, %s276
      %p288 = scmp.eq.s32.totalorder %s35, 1
      %p289 = por %p287, %p288
      %p291 = scmp.ne.s32.totalorder %s276, %s290
      %p292 = scmp.eq.s32.totalorder %s35, 0
      %p293 = por %p291, %p292
      %s295 = sadd.s32 %s294, 1
      %p298 = scmp.eq.s32.totalorder %s29, 1
      %p299 = scmp.ne.s32.totalorder %s294, %s296
      %p300 = scmp.eq.s32.totalorder %s29, 0
      %p301 = por %p299, %p300
      %p302 = scmp.ne.s32.totalorder %s294, %s296
      %p303 = scmp.eq.s32.totalorder %s34, 1
      %p304 = por %p302, %p303
      %p305 = scmp.ne.s32.totalorder %s296, %s297
      %p306 = scmp.eq.s32.totalorder %s34, 0
      %p307 = por %p305, %p306
      %p308 = scmp.ne.s32.totalorder %s296, %s297
      %p309 = scmp.eq.s32.totalorder %s35, 1
      %p310 = por %p308, %p309
      %p312 = scmp.ne.s32.totalorder %s297, %s311
      %p313 = scmp.eq.s32.totalorder %s35, 0
      %p314 = por %p312, %p313
      %s316 = sadd.s32 %s315, 1
      %p319 = scmp.eq.s32.totalorder %s29, 1
      %p320 = scmp.ne.s32.totalorder %s315, %s317
      %p321 = scmp.eq.s32.totalorder %s29, 0
      %p322 = por %p320, %p321
      %p323 = scmp.ne.s32.totalorder %s315, %s317
      %p324 = scmp.eq.s32.totalorder %s34, 1
      %p325 = por %p323, %p324
      %p326 = scmp.ne.s32.totalorder %s317, %s318
      %p327 = scmp.eq.s32.totalorder %s34, 0
      %p328 = por %p326, %p327
      %p329 = scmp.ne.s32.totalorder %s317, %s318
      %p330 = scmp.eq.s32.totalorder %s35, 1
      %p331 = por %p329, %p330
      %p333 = scmp.ne.s32.totalorder %s318, %s332
      %p334 = scmp.eq.s32.totalorder %s35, 0
      %p335 = por %p333, %p334
      %s337 = sadd.s32 %s336, 1
      %p340 = scmp.eq.s32.totalorder %s29, 1
      %p341 = scmp.ne.s32.totalorder %s336, %s338
      %p342 = scmp.eq.s32.totalorder %s29, 0
      %p343 = por %p341, %p342
      %p344 = scmp.ne.s32.totalorder %s336, %s338
      %p345 = scmp.eq.s32.totalorder %s34, 1
      %p346 = por %p344, %p345
      %p347 = scmp.ne.s32.totalorder %s338, %s339
      %p348 = scmp.eq.s32.totalorder %s34, 0
      %p349 = por %p347, %p348
      %p350 = scmp.ne.s32.totalorder %s338, %s339
      %p351 = scmp.eq.s32.totalorder %s35, 1
      %p352 = por %p350, %p351
      %p354 = scmp.ne.s32.totalorder %s339, %s353
      %p355 = scmp.eq.s32.totalorder %s35, 0
      %p356 = por %p354, %p355
      %s357 = ssub.s32 %s29, %s36
      %p358 = scmp.eq.s32.totalorder %s357, 0
      %s360 = sadd.s32 %s359, 1
      %s361 = scalar_select %p358, %s359, %s360
      %p364 = pneg %p358
      %p365 = scmp.eq.s32.totalorder %s29, 1
      %p366 = por %p364, %p365
      %p367 = scmp.ne.s32.totalorder %s359, %s362
      %p368 = scmp.eq.s32.totalorder %s29, 0
      %p369 = por %p367, %p368
      %p370 = scmp.ne.s32.totalorder %s359, %s362
      %p371 = scmp.eq.s32.totalorder %s34, 1
      %p372 = por %p370, %p371
      %p373 = scmp.ne.s32.totalorder %s362, %s363
      %p374 = scmp.eq.s32.totalorder %s34, 0
      %p375 = por %p373, %p374
      %p376 = scmp.ne.s32.totalorder %s362, %s363
      %p377 = scmp.eq.s32.totalorder %s35, 1
      %p378 = por %p376, %p377
      %p380 = scmp.ne.s32.totalorder %s363, %s379
      %p381 = scmp.eq.s32.totalorder %s35, 0
      %p382 = por %p380, %p381
      %s383 = ssub.s32 %s29, %s36
      %p384 = scmp.eq.s32.totalorder %s383, 0
      %s386 = sadd.s32 %s385, 1
      %s387 = scalar_select %p384, %s385, %s386
      %p390 = pneg %p384
      %p391 = scmp.eq.s32.totalorder %s29, 1
      %p392 = por %p390, %p391
      %p393 = scmp.ne.s32.totalorder %s385, %s388
      %p394 = scmp.eq.s32.totalorder %s29, 0
      %p395 = por %p393, %p394
      %p396 = scmp.ne.s32.totalorder %s385, %s388
      %p397 = scmp.eq.s32.totalorder %s34, 1
      %p398 = por %p396, %p397
      %p399 = scmp.ne.s32.totalorder %s388, %s389
      %p400 = scmp.eq.s32.totalorder %s34, 0
      %p401 = por %p399, %p400
      %p402 = scmp.ne.s32.totalorder %s388, %s389
      %p403 = scmp.eq.s32.totalorder %s35, 1
      %p404 = por %p402, %p403
      %p406 = scmp.ne.s32.totalorder %s389, %s405
      %p407 = scmp.eq.s32.totalorder %s35, 0
      %p408 = por %p406, %p407
      %p409 = scmp.le.s32.totalorder 1, %s29
      %p410 = scmp.lt.s32.totalorder %s29, 3
      %p411 = pnand %p409, %p410
      %p412 = pneg %p411
      // Predicated region
      $region9: #{tpu_custom_call.1} parent=5 // pred_check
        _
      $region10: #{tpu_custom_call.1} parent=5 // pred_check_branch
        %414 = sbr.rel (%p411) target = $region12
      $region11: #{tpu_custom_call.1} parent=5 // pred_region
        %s415 = ssub.s32 %s29, 1
        // Predicated region
        $region13: #{tpu_custom_call.1} parent=11 // pred_check
          %p416 = pneg %p76
        $region14: #{tpu_custom_call.1} parent=11 // pred_check_branch
          %418 = sbr.rel (%p416) target = $region16
        $region15: #{tpu_custom_call.1} parent=11 // pred_region
          _
        $region16: #{tpu_custom_call.1} parent=11 // pred_fallthru
          _
        // Predicated region
        $region17: #{tpu_custom_call.1} parent=11 // pred_check
          %p419 = pneg %p97
        $region18: #{tpu_custom_call.1} parent=11 // pred_check_branch
          %421 = sbr.rel (%p419) target = $region20
        $region19: #{tpu_custom_call.1} parent=11 // pred_region
          _
        $region20: #{tpu_custom_call.1} parent=11 // pred_fallthru
          _
        // Predicated region
        $region21: #{tpu_custom_call.1} parent=11 // pred_check
          %p422 = pneg %p118
        $region22: #{tpu_custom_call.1} parent=11 // pred_check_branch
          %424 = sbr.rel (%p422) target = $region24
        $region23: #{tpu_custom_call.1} parent=11 // pred_region
          _
        $region24: #{tpu_custom_call.1} parent=11 // pred_fallthru
          _
        // Predicated region
        $region25: #{tpu_custom_call.1} parent=11 // pred_check
          %p425 = pneg %p139
        $region26: #{tpu_custom_call.1} parent=11 // pred_check_branch
          %427 = sbr.rel (%p425) target = $region28
        $region27: #{tpu_custom_call.1} parent=11 // pred_region
          _
        $region28: #{tpu_custom_call.1} parent=11 // pred_fallthru
          _
        // Predicated region
        $region29: #{tpu_custom_call.1} parent=11 // pred_check
          %p428 = pneg %p160
        $region30: #{tpu_custom_call.1} parent=11 // pred_check_branch
          %430 = sbr.rel (%p428) target = $region32
        $region31: #{tpu_custom_call.1} parent=11 // pred_region
          _
        $region32: #{tpu_custom_call.1} parent=11 // pred_fallthru
          _
        // Predicated region
        $region33: #{tpu_custom_call.1} parent=11 // pred_check
          %p431 = pneg %p181
        $region34: #{tpu_custom_call.1} parent=11 // pred_check_branch
          %433 = sbr.rel (%p431) target = $region36
        $region35: #{tpu_custom_call.1} parent=11 // pred_region
          _
        $region36: #{tpu_custom_call.1} parent=11 // pred_fallthru
          _
        // Predicated region
        $region37: #{tpu_custom_call.1} parent=11 // pred_check
          %p434 = pneg %p202
        $region38: #{tpu_custom_call.1} parent=11 // pred_check_branch
          %436 = sbr.rel (%p434) target = $region40
        $region39: #{tpu_custom_call.1} parent=11 // pred_region
          _
        $region40: #{tpu_custom_call.1} parent=11 // pred_fallthru
          _
        // Predicated region
        $region41: #{tpu_custom_call.1} parent=11 // pred_check
          %p437 = pneg %p223
        $region42: #{tpu_custom_call.1} parent=11 // pred_check_branch
          %439 = sbr.rel (%p437) target = $region44
        $region43: #{tpu_custom_call.1} parent=11 // pred_region
          _
        $region44: #{tpu_custom_call.1} parent=11 // pred_fallthru
          _
        // Predicated region
        $region45: #{tpu_custom_call.1} parent=11 // pred_check
          %p440 = pneg %p244
        $region46: #{tpu_custom_call.1} parent=11 // pred_check_branch
          %442 = sbr.rel (%p440) target = $region48
        $region47: #{tpu_custom_call.1} parent=11 // pred_region
          _
        $region48: #{tpu_custom_call.1} parent=11 // pred_fallthru
          _
        // Predicated region
        $region49: #{tpu_custom_call.1} parent=11 // pred_check
          %p443 = pneg %p265
        $region50: #{tpu_custom_call.1} parent=11 // pred_check_branch
          %445 = sbr.rel (%p443) target = $region52
        $region51: #{tpu_custom_call.1} parent=11 // pred_region
          _
        $region52: #{tpu_custom_call.1} parent=11 // pred_fallthru
          _
        // Predicated region
        $region53: #{tpu_custom_call.1} parent=11 // pred_check
          %p446 = pneg %p286
        $region54: #{tpu_custom_call.1} parent=11 // pred_check_branch
          %448 = sbr.rel (%p446) target = $region56
        $region55: #{tpu_custom_call.1} parent=11 // pred_region
          _
        $region56: #{tpu_custom_call.1} parent=11 // pred_fallthru
          _
        // Predicated region
        $region57: #{tpu_custom_call.1} parent=11 // pred_check
          %p449 = pneg %p307
        $region58: #{tpu_custom_call.1} parent=11 // pred_check_branch
          %451 = sbr.rel (%p449) target = $region60
        $region59: #{tpu_custom_call.1} parent=11 // pred_region
          _
        $region60: #{tpu_custom_call.1} parent=11 // pred_fallthru
          _
        // Predicated region
        $region61: #{tpu_custom_call.1} parent=11 // pred_check
          %p452 = pneg %p328
        $region62: #{tpu_custom_call.1} parent=11 // pred_check_branch
          %454 = sbr.rel (%p452) target = $region64
        $region63: #{tpu_custom_call.1} parent=11 // pred_region
          _
        $region64: #{tpu_custom_call.1} parent=11 // pred_fallthru
          _
        // Predicated region
        $region65: #{tpu_custom_call.1} parent=11 // pred_check
          %p455 = pneg %p349
        $region66: #{tpu_custom_call.1} parent=11 // pred_check_branch
          %457 = sbr.rel (%p455) target = $region68
        $region67: #{tpu_custom_call.1} parent=11 // pred_region
          _
        $region68: #{tpu_custom_call.1} parent=11 // pred_fallthru
          _
      $region12: #{tpu_custom_call.1} parent=5 // pred_fallthru
        _
      %p458 = scmp.lt.s32.totalorder %s29, 2
      // Predicated region
      $region69: #{tpu_custom_call.1} parent=5 // pred_check
        %p459 = pneg %p458
      $region70: #{tpu_custom_call.1} parent=5 // pred_check_branch
        %461 = sbr.rel (%p459) target = $region72
      $region71: #{tpu_custom_call.1} parent=5 // pred_region
        // Predicated region
        $region73: #{tpu_custom_call.1} parent=71 // pred_check
          %p462 = pneg %p49
        $region74: #{tpu_custom_call.1} parent=71 // pred_check_branch
          %464 = sbr.rel (%p462) target = $region76
        $region75: #{tpu_custom_call.1} parent=71 // pred_region
          %p465 = scmp.lt.s32.totalorder %s29, 1
          %s466 = scalar_select %p465, %s29, 1
          %s467 = smul.addr %s466, 8
          %s468 = scalar_lea.vmem %s0, %s467
        $region76: #{tpu_custom_call.1} parent=71 // pred_fallthru
          _
      $region72: #{tpu_custom_call.1} parent=5 // pred_fallthru
        _
      %p469 = scmp.le.s32.totalorder 1, %s29
      %p470 = scmp.lt.s32.totalorder %s29, 3
      %p471 = pnand %p469, %p470
      %p472 = pneg %p471
      // Predicated region
      $region77: #{tpu_custom_call.1} parent=5 // pred_check
        _
      $region78: #{tpu_custom_call.1} parent=5 // pred_check_branch
        %474 = sbr.rel (%p471) target = $region80
      $region79: #{tpu_custom_call.1} parent=5 // pred_region
        %s475 = ssub.s32 %s29, 1
        %p476 = scmp.lt.s32.totalorder %s34, 1
        %s477 = scalar_select %p476, %s34, 1
        %s478 = smul.addr %s477, 8
        %s479 = scalar_lea.vmem %s0, %s478
        %p480 = pneg %p55
        %p481 = pneg %p52
        %p482 = pneg %p76
        %p483 = pneg %p73
        %p484 = pneg %p97
        %p485 = pneg %p94
        %p486 = pneg %p118
        %p487 = pneg %p115
        %p488 = pneg %p139
        %p489 = pneg %p136
        %p490 = pneg %p160
        %p491 = pneg %p157
        %p492 = pneg %p181
        %p493 = pneg %p178
        %p494 = pneg %p202
        %p495 = pneg %p199
        %p496 = pneg %p223
        %p497 = pneg %p220
        %p498 = pneg %p244
        %p499 = pneg %p241
        %p500 = pneg %p265
        %p501 = pneg %p262
        %p502 = pneg %p286
        %p503 = pneg %p283
        %p504 = pneg %p307
        %p505 = pneg %p304
        %p506 = pneg %p328
        %p507 = pneg %p325
        %p508 = pneg %p349
        %p509 = pneg %p346
        %p510 = pneg %p375
        %p511 = pneg %p372
        %s512 = sand.u32 %s362, 1
        %s513 = scalar_lea.sflag [#allocation3], %s512
        %s514 = sand.u32 %s362, 1
        %s515 = smul.addr %s514, 8
        %s516 = scalar_lea.vmem [#allocation2], %s515
        %p517 = pneg %p401
        %p518 = pneg %p398
        %s519 = sand.u32 %s388, 1
        %s520 = scalar_lea.sflag [#allocation5], %s519
        %s521 = sand.u32 %s388, 1
        %s522 = smul.addr %s521, 32
        %s523 = scalar_lea.vmem [#allocation4], %s522
        %p524 = scmp.lt.s32.totalorder %s34, 1
        %s525 = scalar_select %p524, %s34, 1
        %s526 = smul.addr %s525, 8
        %s527 = scalar_lea.vmem %s0, %s526
        %v528 = vld [vmem:[%s527] sm:$0xff]
        %v529 = vld [vmem:[%s1] sm:$0xff]
        %v530 = vld [vmem:[%s1 + $0x8] sm:$0xff]
        %v531 = vld [vmem:[%s1 + $0x10] sm:$0xff]
        %v532 = vld [vmem:[%s1 + $0x18] sm:$0xff]
        %vm533 = vcmask 261120
        %v535 = vsel %vm533, %v528, 0
        %537 = vmatprep.subr.mxu0 0.0
        %538 = vmatpush1.msra.mxu0 0.0
        %539 = vmatprep.subr.mxu0 0.0
        %540 = vmatpush1.msra.mxu0 0.0
        %541 = vmatprep.subr.mxu0 0.0
        %542 = vmatpush1.msra.mxu0 0.0
        %543 = vmatprep.subr.mxu0 0.0
        %544 = vmatpush1.msra.mxu0 0.0
        %545 = vmatprep.subr.mxu0 0.0
        %546 = vmatpush1.msra.mxu0 0.0
        %547 = vmatprep.subr.mxu0 0.0
        %548 = vmatpush1.msra.mxu0 0.0
        %549 = vmatprep.subr.mxu0 0.0
        %550 = vmatpush1.msra.mxu0 0.0
        %551 = vmatprep.subr.mxu0 0.0
        %552 = vmatpush1.msra.mxu0 0.0
        %553 = vmatprep.subr.mxu0 0.0
        %554 = vmatpush1.msra.mxu0 0.0
        %555 = vmatprep.subr.mxu0 0.0
        %556 = vmatpush1.msra.mxu0 0.0
        %557 = vmatprep.subr.mxu0 0.0
        %558 = vmatpush1.msra.mxu0 0.0
        %559 = vmatprep.subr.mxu0 0.0
        %560 = vmatpush1.msra.mxu0 0.0
        %561 = vmatprep.subr.mxu0 0.0
        %562 = vmatpush1.msra.mxu0 %v532
        %563 = vmatprep.subr.mxu0 0.0
        %564 = vmatpush1.msra.mxu0 %v531
        %565 = vmatprep.subr.mxu0 0.0
        %566 = vmatpush1.msra.mxu0 %v530
        %567 = vmatprep.subr.mxu0 0.0
        %568 = vmatpush1.msra.mxu0 %v529
        %569 = vmatprep.subr.mxu0 0.0
        %570 = vmatpush2.msra.mxu0 0.0
        %571 = vmatprep.subr.mxu0 0.0
        %572 = vmatpush2.msra.mxu0 0.0
        %573 = vmatprep.subr.mxu0 0.0
        %574 = vmatpush2.msra.mxu0 0.0
        %575 = vmatprep.subr.mxu0 0.0
        %576 = vmatpush2.msra.mxu0 0.0
        %577 = vmatprep.subr.mxu0 0.0
        %578 = vmatpush2.msra.mxu0 0.0
        %579 = vmatprep.subr.mxu0 0.0
        %580 = vmatpush2.msra.mxu0 0.0
        %581 = vmatprep.subr.mxu0 0.0
        %582 = vmatpush2.msra.mxu0 0.0
        %583 = vmatprep.subr.mxu0 0.0
        %584 = vmatpush2.msra.mxu0 0.0
        %585 = vmatprep.subr.mxu0 0.0
        %586 = vmatpush2.msra.mxu0 0.0
        %587 = vmatprep.subr.mxu0 0.0
        %588 = vmatpush2.msra.mxu0 0.0
        %589 = vmatprep.subr.mxu0 0.0
        %590 = vmatpush2.msra.mxu0 0.0
        %591 = vmatprep.subr.mxu0 0.0
        %592 = vmatpush2.msra.mxu0 0.0
        %593 = vmatprep.subr.mxu0 0.0
        %594 = vmatpush2.msra.mxu0 0.0
        %595 = vmatprep.subr.mxu0 0.0
        %596 = vmatpush2.msra.mxu0 0.0
        %597 = vmatprep.subr.mxu0 0.0
        %598 = vmatpush2.msra.mxu0 0.0
        %599 = vmatprep.subr.mxu0 0.0
        %600 = vmatpush2.msra.mxu0 0.0
        %601 = vmatprep.mubr.f32.mxu0 0.0
        %602 = vmatmul.mubr.f32.gmra.mxu0 %v535
        %v603 = vpop.f32.mrf.mxu0
        %v604 = vadd.f32 0.0, %v603
        %v605 = vpop.f32.mrf.mxu0
        %606 = vdwg.mxu0
        %608 = vrot.lane.b32.xlu0 %v604, 96
        %v609 = vpop.permute.xlu0 %608
        %vm610 = vcmask 64512
        %v611 = vsel %vm610, %v604, 0
        %v613 = vsel %vm610, %v609, 0
        %615 = vmatprep.subr.mxu0 0.0
        %616 = vmatpush1.xpose.msra.mxu0 0.0
        %617 = vmatprep.subr.mxu0 0.0
        %618 = vmatpush1.xpose.msra.mxu0 0.0
        %619 = vmatprep.subr.mxu0 0.0
        %620 = vmatpush1.xpose.msra.mxu0 0.0
        %621 = vmatprep.subr.mxu0 0.0
        %622 = vmatpush1.xpose.msra.mxu0 0.0
        %623 = vmatprep.subr.mxu0 0.0
        %624 = vmatpush1.xpose.msra.mxu0 0.0
        %625 = vmatprep.subr.mxu0 0.0
        %626 = vmatpush1.xpose.msra.mxu0 0.0
        %627 = vmatprep.subr.mxu0 0.0
        %628 = vmatpush1.xpose.msra.mxu0 0.0
        %629 = vmatprep.subr.mxu0 0.0
        %630 = vmatpush1.xpose.msra.mxu0 0.0
        %631 = vmatprep.subr.mxu0 0.0
        %632 = vmatpush1.xpose.msra.mxu0 0.0
        %633 = vmatprep.subr.mxu0 0.0
        %634 = vmatpush1.xpose.msra.mxu0 0.0
        %635 = vmatprep.subr.mxu0 0.0
        %636 = vmatpush1.xpose.msra.mxu0 0.0
        %637 = vmatprep.subr.mxu0 0.0
        %638 = vmatpush1.xpose.msra.mxu0 0.0
        %639 = vmatprep.subr.mxu0 0.0
        %640 = vmatpush1.xpose.msra.mxu0 0.0
        %641 = vmatprep.subr.mxu0 0.0
        %642 = vmatpush1.xpose.msra.mxu0 0.0
        %643 = vmatprep.subr.mxu0 0.0
        %644 = vmatpush1.xpose.msra.mxu0 0.0
        %645 = vmatprep.subr.mxu0 0.0
        %646 = vmatpush1.xpose.msra.mxu0 %v613
        %647 = vmatprep.subr.mxu0 0.0
        %648 = vmatpush2.xpose.msra.mxu0 0.0
        %649 = vmatprep.subr.mxu0 0.0
        %650 = vmatpush2.xpose.msra.mxu0 0.0
        %651 = vmatprep.subr.mxu0 0.0
        %652 = vmatpush2.xpose.msra.mxu0 0.0
        %653 = vmatprep.subr.mxu0 0.0
        %654 = vmatpush2.xpose.msra.mxu0 0.0
        %655 = vmatprep.subr.mxu0 0.0
        %656 = vmatpush2.xpose.msra.mxu0 0.0
        %657 = vmatprep.subr.mxu0 0.0
        %658 = vmatpush2.xpose.msra.mxu0 0.0
        %659 = vmatprep.subr.mxu0 0.0
        %660 = vmatpush2.xpose.msra.mxu0 0.0
        %661 = vmatprep.subr.mxu0 0.0
        %662 = vmatpush2.xpose.msra.mxu0 0.0
        %663 = vmatprep.subr.mxu0 0.0
        %664 = vmatpush2.xpose.msra.mxu0 0.0
        %665 = vmatprep.subr.mxu0 0.0
        %666 = vmatpush2.xpose.msra.mxu0 0.0
        %667 = vmatprep.subr.mxu0 0.0
        %668 = vmatpush2.xpose.msra.mxu0 0.0
        %669 = vmatprep.subr.mxu0 0.0
        %670 = vmatpush2.xpose.msra.mxu0 0.0
        %671 = vmatprep.subr.mxu0 0.0
        %672 = vmatpush2.xpose.msra.mxu0 0.0
        %673 = vmatprep.subr.mxu0 0.0
        %674 = vmatpush2.xpose.msra.mxu0 0.0
        %675 = vmatprep.subr.mxu0 0.0
        %676 = vmatpush2.xpose.msra.mxu0 0.0
        %677 = vmatprep.subr.mxu0 0.0
        %678 = vmatpush2.xpose.msra.mxu0 0.0
        %679 = vmatprep.mubr.f32.mxu0 0.0
        %680 = vmatmul.mubr.f32.gmra.mxu0 %v611
        %v681 = vpop.f32.mrf.mxu0
        %v682 = vadd.f32 0.0, %v681
        %v683 = vpop.f32.mrf.mxu0
        %684 = vdwg.mxu0
        %v685 = vmul.f32 %v682, 0.17677669
        %v686 = vsel %vm610, %v685, -inf
        %687 = vmax.xlane.f32.xlu0 %v686
        %v688 = vpop.xlane.xlu0 %687
        %v689 = vsub.f32 %v685, %v688
        %v690 = vmul.f32 %v689, 1.442695
        %v691 = vpow.pop %v690
        %v692 = vsel %vm610, %v691, 0.0
        %693 = vadd.xlane.f32.xlu0 %v692
        %v694 = vpop.xlane.xlu0 %693
        %v695 = vrcp.pop %v694
        %v696 = vmul.f32 %v691, %v695
        %697 = vst.msk [vmem:[%s523] sm:$0xff] %vm610, %v696
        %698 = vrot.lane.b32.xlu0 %v604, 64
        %v699 = vpop.permute.xlu0 %698
        %v702 = vsel %vm610, %v696, 0
        %704 = vmatprep.subr.mxu0 0.0
        %705 = vmatpush1.msra.mxu0 0.0
        %706 = vmatprep.subr.mxu0 0.0
        %707 = vmatpush1.msra.mxu0 0.0
        %708 = vmatprep.subr.mxu0 0.0
        %709 = vmatpush1.msra.mxu0 0.0
        %710 = vmatprep.subr.mxu0 0.0
        %711 = vmatpush1.msra.mxu0 0.0
        %712 = vmatprep.subr.mxu0 0.0
        %713 = vmatpush1.msra.mxu0 0.0
        %714 = vmatprep.subr.mxu0 0.0
        %715 = vmatpush1.msra.mxu0 0.0
        %716 = vmatprep.subr.mxu0 0.0
        %717 = vmatpush1.msra.mxu0 0.0
        %718 = vmatprep.subr.mxu0 0.0
        %719 = vmatpush1.msra.mxu0 0.0
        %720 = vmatprep.subr.mxu0 0.0
        %721 = vmatpush1.msra.mxu0 0.0
        %722 = vmatprep.subr.mxu0 0.0
        %723 = vmatpush1.msra.mxu0 0.0
        %724 = vmatprep.subr.mxu0 0.0
        %725 = vmatpush1.msra.mxu0 0.0
        %726 = vmatprep.subr.mxu0 0.0
        %727 = vmatpush1.msra.mxu0 0.0
        %728 = vmatprep.subr.mxu0 0.0
        %729 = vmatpush1.msra.mxu0 0.0
        %730 = vmatprep.subr.mxu0 0.0
        %731 = vmatpush1.msra.mxu0 0.0
        %732 = vmatprep.subr.mxu0 0.0
        %733 = vmatpush1.msra.mxu0 0.0
        %734 = vmatprep.subr.mxu0 0.0
        %735 = vmatpush1.msra.mxu0 %v699
        %736 = vmatprep.subr.mxu0 0.0
        %737 = vmatpush2.msra.mxu0 0.0
        %738 = vmatprep.subr.mxu0 0.0
        %739 = vmatpush2.msra.mxu0 0.0
        %740 = vmatprep.subr.mxu0 0.0
        %741 = vmatpush2.msra.mxu0 0.0
        %742 = vmatprep.subr.mxu0 0.0
        %743 = vmatpush2.msra.mxu0 0.0
        %744 = vmatprep.subr.mxu0 0.0
        %745 = vmatpush2.msra.mxu0 0.0
        %746 = vmatprep.subr.mxu0 0.0
        %747 = vmatpush2.msra.mxu0 0.0
        %748 = vmatprep.subr.mxu0 0.0
        %749 = vmatpush2.msra.mxu0 0.0
        %750 = vmatprep.subr.mxu0 0.0
        %751 = vmatpush2.msra.mxu0 0.0
        %752 = vmatprep.subr.mxu0 0.0
        %753 = vmatpush2.msra.mxu0 0.0
        %754 = vmatprep.subr.mxu0 0.0
        %755 = vmatpush2.msra.mxu0 0.0
        %756 = vmatprep.subr.mxu0 0.0
        %757 = vmatpush2.msra.mxu0 0.0
        %758 = vmatprep.subr.mxu0 0.0
        %759 = vmatpush2.msra.mxu0 0.0
        %760 = vmatprep.subr.mxu0 0.0
        %761 = vmatpush2.msra.mxu0 0.0
        %762 = vmatprep.subr.mxu0 0.0
        %763 = vmatpush2.msra.mxu0 0.0
        %764 = vmatprep.subr.mxu0 0.0
        %765 = vmatpush2.msra.mxu0 0.0
        %766 = vmatprep.subr.mxu0 0.0
        %767 = vmatpush2.msra.mxu0 0.0
        %768 = vmatprep.mubr.f32.mxu0 0.0
        %769 = vmatmul.mubr.f32.gmra.mxu0 %v702
        %v770 = vpop.f32.mrf.mxu0
        %v771 = vadd.f32 0.0, %v770
        %v772 = vpop.f32.mrf.mxu0
        %773 = vdwg.mxu0
        %774 = vxpose.xlu0.b32.start [1/16] %v696, 128
        %775 = vxpose.xlu0.b32.cont [2/16] 0.0, 128
        %776 = vxpose.xlu0.b32.cont [3/16] 0.0, 128
        %777 = vxpose.xlu0.b32.cont [4/16] 0.0, 128
        %778 = vxpose.xlu0.b32.cont [5/16] 0.0, 128
        %779 = vxpose.xlu0.b32.cont [6/16] 0.0, 128
        %780 = vxpose.xlu0.b32.cont [7/16] 0.0, 128
        %781 = vxpose.xlu0.b32.cont [8/16] 0.0, 128
        %782 = vxpose.xlu0.b32.cont [9/16] 0.0, 128
        %783 = vxpose.xlu0.b32.cont [10/16] 0.0, 128
        %784 = vxpose.xlu0.b32.cont [11/16] 0.0, 128
        %785 = vxpose.xlu0.b32.cont [12/16] 0.0, 128
        %786 = vxpose.xlu0.b32.cont [13/16] 0.0, 128
        %787 = vxpose.xlu0.b32.cont [14/16] 0.0, 128
        %788 = vxpose.xlu0.b32.cont [15/16] 0.0, 128
        %789 = vxpose.xlu0.b32.end [16/16] 0.0, 128
        %v790 = vpop.trf.xlu0
        %v791 = vpop.trf.xlu0
        %v792 = vpop.trf.xlu0
        %v793 = vpop.trf.xlu0
        %v794 = vpop.trf.xlu0
        %v795 = vpop.trf.xlu0
        %v796 = vpop.trf.xlu0
        %v797 = vpop.trf.xlu0
        %v798 = vpop.trf.xlu0
        %v799 = vpop.trf.xlu0
        %v800 = vpop.trf.xlu0
        %v801 = vpop.trf.xlu0
        %v802 = vpop.trf.xlu0
        %v803 = vpop.trf.xlu0
        %v804 = vpop.trf.xlu0
        %v805 = vpop.trf.xlu0
        %807 = vrot.lane.b32.xlu0 %v790, 8
        %v808 = vpop.permute.xlu0 %807
        %v810 = vsel %vm610, %v696, %v808
        %811 = vrot.lane.b32.xlu0 %v604, 120
        %v812 = vpop.permute.xlu0 %811
        %813 = vrot.lane.b32.xlu0 %v604, 88
        %v814 = vpop.permute.xlu0 %813
        %v815 = vsel %vm610, %v812, 0
        %v817 = vsel %vm610, %v814, 0
        %819 = vmatprep.subr.mxu0 0.0
        %820 = vmatpush1.xpose.msra.mxu0 0.0
        %821 = vmatprep.subr.mxu0 0.0
        %822 = vmatpush1.xpose.msra.mxu0 0.0
        %823 = vmatprep.subr.mxu0 0.0
        %824 = vmatpush1.xpose.msra.mxu0 0.0
        %825 = vmatprep.subr.mxu0 0.0
        %826 = vmatpush1.xpose.msra.mxu0 0.0
        %827 = vmatprep.subr.mxu0 0.0
        %828 = vmatpush1.xpose.msra.mxu0 0.0
        %829 = vmatprep.subr.mxu0 0.0
        %830 = vmatpush1.xpose.msra.mxu0 0.0
        %831 = vmatprep.subr.mxu0 0.0
        %832 = vmatpush1.xpose.msra.mxu0 0.0
        %833 = vmatprep.subr.mxu0 0.0
        %834 = vmatpush1.xpose.msra.mxu0 0.0
        %835 = vmatprep.subr.mxu0 0.0
        %836 = vmatpush1.xpose.msra.mxu0 0.0
        %837 = vmatprep.subr.mxu0 0.0
        %838 = vmatpush1.xpose.msra.mxu0 0.0
        %839 = vmatprep.subr.mxu0 0.0
        %840 = vmatpush1.xpose.msra.mxu0 0.0
        %841 = vmatprep.subr.mxu0 0.0
        %842 = vmatpush1.xpose.msra.mxu0 0.0
        %843 = vmatprep.subr.mxu0 0.0
        %844 = vmatpush1.xpose.msra.mxu0 0.0
        %845 = vmatprep.subr.mxu0 0.0
        %846 = vmatpush1.xpose.msra.mxu0 0.0
        %847 = vmatprep.subr.mxu0 0.0
        %848 = vmatpush1.xpose.msra.mxu0 0.0
        %849 = vmatprep.subr.mxu0 0.0
        %850 = vmatpush1.xpose.msra.mxu0 %v817
        %851 = vmatprep.subr.mxu0 0.0
        %852 = vmatpush2.xpose.msra.mxu0 0.0
        %853 = vmatprep.subr.mxu0 0.0
        %854 = vmatpush2.xpose.msra.mxu0 0.0
        %855 = vmatprep.subr.mxu0 0.0
        %856 = vmatpush2.xpose.msra.mxu0 0.0
        %857 = vmatprep.subr.mxu0 0.0
        %858 = vmatpush2.xpose.msra.mxu0 0.0
        %859 = vmatprep.subr.mxu0 0.0
        %860 = vmatpush2.xpose.msra.mxu0 0.0
        %861 = vmatprep.subr.mxu0 0.0
        %862 = vmatpush2.xpose.msra.mxu0 0.0
        %863 = vmatprep.subr.mxu0 0.0
        %864 = vmatpush2.xpose.msra.mxu0 0.0
        %865 = vmatprep.subr.mxu0 0.0
        %866 = vmatpush2.xpose.msra.mxu0 0.0
        %867 = vmatprep.subr.mxu0 0.0
        %868 = vmatpush2.xpose.msra.mxu0 0.0
        %869 = vmatprep.subr.mxu0 0.0
        %870 = vmatpush2.xpose.msra.mxu0 0.0
        %871 = vmatprep.subr.mxu0 0.0
        %872 = vmatpush2.xpose.msra.mxu0 0.0
        %873 = vmatprep.subr.mxu0 0.0
        %874 = vmatpush2.xpose.msra.mxu0 0.0
        %875 = vmatprep.subr.mxu0 0.0
        %876 = vmatpush2.xpose.msra.mxu0 0.0
        %877 = vmatprep.subr.mxu0 0.0
        %878 = vmatpush2.xpose.msra.mxu0 0.0
        %879 = vmatprep.subr.mxu0 0.0
        %880 = vmatpush2.xpose.msra.mxu0 0.0
        %881 = vmatprep.subr.mxu0 0.0
        %882 = vmatpush2.xpose.msra.mxu0 0.0
        %883 = vmatprep.mubr.f32.mxu0 0.0
        %884 = vmatmul.mubr.f32.gmra.mxu0 %v815
        %v885 = vpop.f32.mrf.mxu0
        %v886 = vadd.f32 0.0, %v885
        %v887 = vpop.f32.mrf.mxu0
        %888 = vdwg.mxu0
        %v889 = vmul.f32 %v886, 0.17677669
        %v890 = vsel %vm610, %v889, -inf
        %891 = vmax.xlane.f32.xlu0 %v890
        %v892 = vpop.xlane.xlu0 %891
        %v893 = vsub.f32 %v889, %v892
        %v894 = vmul.f32 %v893, 1.442695
        %v895 = vpow.pop %v894
        %v896 = vsel %vm610, %v895, 0.0
        %897 = vadd.xlane.f32.xlu0 %v896
        %v898 = vpop.xlane.xlu0 %897
        %v899 = vrcp.pop %v898
        %v900 = vmul.f32 %v895, %v899
        %s901 = scalar_lea.vmem %s523, 8 [#allocation4]
        %902 = vst.msk [vmem:[%s901] sm:$0xff] %vm610, %v900
        %903 = vrot.lane.b32.xlu0 %v604, 56
        %v904 = vpop.permute.xlu0 %903
        %v907 = vsel %vm610, %v900, 0
        %909 = vmatprep.subr.mxu0 0.0
        %910 = vmatpush1.msra.mxu0 0.0
        %911 = vmatprep.subr.mxu0 0.0
        %912 = vmatpush1.msra.mxu0 0.0
        %913 = vmatprep.subr.mxu0 0.0
        %914 = vmatpush1.msra.mxu0 0.0
        %915 = vmatprep.subr.mxu0 0.0
        %916 = vmatpush1.msra.mxu0 0.0
        %917 = vmatprep.subr.mxu0 0.0
        %918 = vmatpush1.msra.mxu0 0.0
        %919 = vmatprep.subr.mxu0 0.0
        %920 = vmatpush1.msra.mxu0 0.0
        %921 = vmatprep.subr.mxu0 0.0
        %922 = vmatpush1.msra.mxu0 0.0
        %923 = vmatprep.subr.mxu0 0.0
        %924 = vmatpush1.msra.mxu0 0.0
        %925 = vmatprep.subr.mxu0 0.0
        %926 = vmatpush1.msra.mxu0 0.0
        %927 = vmatprep.subr.mxu0 0.0
        %928 = vmatpush1.msra.mxu0 0.0
        %929 = vmatprep.subr.mxu0 0.0
        %930 = vmatpush1.msra.mxu0 0.0
        %931 = vmatprep.subr.mxu0 0.0
        %932 = vmatpush1.msra.mxu0 0.0
        %933 = vmatprep.subr.mxu0 0.0
        %934 = vmatpush1.msra.mxu0 0.0
        %935 = vmatprep.subr.mxu0 0.0
        %936 = vmatpush1.msra.mxu0 0.0
        %937 = vmatprep.subr.mxu0 0.0
        %938 = vmatpush1.msra.mxu0 0.0
        %939 = vmatprep.subr.mxu0 0.0
        %940 = vmatpush1.msra.mxu0 %v904
        %941 = vmatprep.subr.mxu0 0.0
        %942 = vmatpush2.msra.mxu0 0.0
        %943 = vmatprep.subr.mxu0 0.0
        %944 = vmatpush2.msra.mxu0 0.0
        %945 = vmatprep.subr.mxu0 0.0
        %946 = vmatpush2.msra.mxu0 0.0
        %947 = vmatprep.subr.mxu0 0.0
        %948 = vmatpush2.msra.mxu0 0.0
        %949 = vmatprep.subr.mxu0 0.0
        %950 = vmatpush2.msra.mxu0 0.0
        %951 = vmatprep.subr.mxu0 0.0
        %952 = vmatpush2.msra.mxu0 0.0
        %953 = vmatprep.subr.mxu0 0.0
        %954 = vmatpush2.msra.mxu0 0.0
        %955 = vmatprep.subr.mxu0 0.0
        %956 = vmatpush2.msra.mxu0 0.0
        %957 = vmatprep.subr.mxu0 0.0
        %958 = vmatpush2.msra.mxu0 0.0
        %959 = vmatprep.subr.mxu0 0.0
        %960 = vmatpush2.msra.mxu0 0.0
        %961 = vmatprep.subr.mxu0 0.0
        %962 = vmatpush2.msra.mxu0 0.0
        %963 = vmatprep.subr.mxu0 0.0
        %964 = vmatpush2.msra.mxu0 0.0
        %965 = vmatprep.subr.mxu0 0.0
        %966 = vmatpush2.msra.mxu0 0.0
        %967 = vmatprep.subr.mxu0 0.0
        %968 = vmatpush2.msra.mxu0 0.0
        %969 = vmatprep.subr.mxu0 0.0
        %970 = vmatpush2.msra.mxu0 0.0
        %971 = vmatprep.subr.mxu0 0.0
        %972 = vmatpush2.msra.mxu0 0.0
        %973 = vmatprep.mubr.f32.mxu0 0.0
        %974 = vmatmul.mubr.f32.gmra.mxu0 %v907
        %v975 = vpop.f32.mrf.mxu0
        %v976 = vadd.f32 0.0, %v975
        %v977 = vpop.f32.mrf.mxu0
        %978 = vdwg.mxu0
        %979 = vxpose.xlu0.b32.start [1/16] %v900, 128
        %980 = vxpose.xlu0.b32.cont [2/16] 0.0, 128
        %981 = vxpose.xlu0.b32.cont [3/16] 0.0, 128
        %982 = vxpose.xlu0.b32.cont [4/16] 0.0, 128
        %983 = vxpose.xlu0.b32.cont [5/16] 0.0, 128
        %984 = vxpose.xlu0.b32.cont [6/16] 0.0, 128
        %985 = vxpose.xlu0.b32.cont [7/16] 0.0, 128
        %986 = vxpose.xlu0.b32.cont [8/16] 0.0, 128
        %987 = vxpose.xlu0.b32.cont [9/16] 0.0, 128
        %988 = vxpose.xlu0.b32.cont [10/16] 0.0, 128
        %989 = vxpose.xlu0.b32.cont [11/16] 0.0, 128
        %990 = vxpose.xlu0.b32.cont [12/16] 0.0, 128
        %991 = vxpose.xlu0.b32.cont [13/16] 0.0, 128
        %992 = vxpose.xlu0.b32.cont [14/16] 0.0, 128
        %993 = vxpose.xlu0.b32.cont [15/16] 0.0, 128
        %994 = vxpose.xlu0.b32.end [16/16] 0.0, 128
        %v995 = vpop.trf.xlu0
        %v996 = vpop.trf.xlu0
        %v997 = vpop.trf.xlu0
        %v998 = vpop.trf.xlu0
        %v999 = vpop.trf.xlu0
        %v1000 = vpop.trf.xlu0
        %v1001 = vpop.trf.xlu0
        %v1002 = vpop.trf.xlu0
        %v1003 = vpop.trf.xlu0
        %v1004 = vpop.trf.xlu0
        %v1005 = vpop.trf.xlu0
        %v1006 = vpop.trf.xlu0
        %v1007 = vpop.trf.xlu0
        %v1008 = vpop.trf.xlu0
        %v1009 = vpop.trf.xlu0
        %v1010 = vpop.trf.xlu0
        %1012 = vrot.lane.b32.xlu0 %v995, 8
        %v1013 = vpop.permute.xlu0 %1012
        %v1015 = vsel %vm610, %v900, %v1013
        %1016 = vrot.lane.b32.xlu0 %v604, 112
        %v1017 = vpop.permute.xlu0 %1016
        %1018 = vrot.lane.b32.xlu0 %v604, 80
        %v1019 = vpop.permute.xlu0 %1018
        %v1020 = vsel %vm610, %v1017, 0
        %v1022 = vsel %vm610, %v1019, 0
        %1024 = vmatprep.subr.mxu0 0.0
        %1025 = vmatpush1.xpose.msra.mxu0 0.0
        %1026 = vmatprep.subr.mxu0 0.0
        %1027 = vmatpush1.xpose.msra.mxu0 0.0
        %1028 = vmatprep.subr.mxu0 0.0
        %1029 = vmatpush1.xpose.msra.mxu0 0.0
        %1030 = vmatprep.subr.mxu0 0.0
        %1031 = vmatpush1.xpose.msra.mxu0 0.0
        %1032 = vmatprep.subr.mxu0 0.0
        %1033 = vmatpush1.xpose.msra.mxu0 0.0
        %1034 = vmatprep.subr.mxu0 0.0
        %1035 = vmatpush1.xpose.msra.mxu0 0.0
        %1036 = vmatprep.subr.mxu0 0.0
        %1037 = vmatpush1.xpose.msra.mxu0 0.0
        %1038 = vmatprep.subr.mxu0 0.0
        %1039 = vmatpush1.xpose.msra.mxu0 0.0
        %1040 = vmatprep.subr.mxu0 0.0
        %1041 = vmatpush1.xpose.msra.mxu0 0.0
        %1042 = vmatprep.subr.mxu0 0.0
        %1043 = vmatpush1.xpose.msra.mxu0 0.0
        %1044 = vmatprep.subr.mxu0 0.0
        %1045 = vmatpush1.xpose.msra.mxu0 0.0
        %1046 = vmatprep.subr.mxu0 0.0
        %1047 = vmatpush1.xpose.msra.mxu0 0.0
        %1048 = vmatprep.subr.mxu0 0.0
        %1049 = vmatpush1.xpose.msra.mxu0 0.0
        %1050 = vmatprep.subr.mxu0 0.0
        %1051 = vmatpush1.xpose.msra.mxu0 0.0
        %1052 = vmatprep.subr.mxu0 0.0
        %1053 = vmatpush1.xpose.msra.mxu0 0.0
        %1054 = vmatprep.subr.mxu0 0.0
        %1055 = vmatpush1.xpose.msra.mxu0 %v1022
        %1056 = vmatprep.subr.mxu0 0.0
        %1057 = vmatpush2.xpose.msra.mxu0 0.0
        %1058 = vmatprep.subr.mxu0 0.0
        %1059 = vmatpush2.xpose.msra.mxu0 0.0
        %1060 = vmatprep.subr.mxu0 0.0
        %1061 = vmatpush2.xpose.msra.mxu0 0.0
        %1062 = vmatprep.subr.mxu0 0.0
        %1063 = vmatpush2.xpose.msra.mxu0 0.0
        %1064 = vmatprep.subr.mxu0 0.0
        %1065 = vmatpush2.xpose.msra.mxu0 0.0
        %1066 = vmatprep.subr.mxu0 0.0
        %1067 = vmatpush2.xpose.msra.mxu0 0.0
        %1068 = vmatprep.subr.mxu0 0.0
        %1069 = vmatpush2.xpose.msra.mxu0 0.0
        %1070 = vmatprep.subr.mxu0 0.0
        %1071 = vmatpush2.xpose.msra.mxu0 0.0
        %1072 = vmatprep.subr.mxu0 0.0
        %1073 = vmatpush2.xpose.msra.mxu0 0.0
        %1074 = vmatprep.subr.mxu0 0.0
        %1075 = vmatpush2.xpose.msra.mxu0 0.0
        %1076 = vmatprep.subr.mxu0 0.0
        %1077 = vmatpush2.xpose.msra.mxu0 0.0
        %1078 = vmatprep.subr.mxu0 0.0
        %1079 = vmatpush2.xpose.msra.mxu0 0.0
        %1080 = vmatprep.subr.mxu0 0.0
        %1081 = vmatpush2.xpose.msra.mxu0 0.0
        %1082 = vmatprep.subr.mxu0 0.0
        %1083 = vmatpush2.xpose.msra.mxu0 0.0
        %1084 = vmatprep.subr.mxu0 0.0
        %1085 = vmatpush2.xpose.msra.mxu0 0.0
        %1086 = vmatprep.subr.mxu0 0.0
        %1087 = vmatpush2.xpose.msra.mxu0 0.0
        %1088 = vmatprep.mubr.f32.mxu0 0.0
        %1089 = vmatmul.mubr.f32.gmra.mxu0 %v1020
        %v1090 = vpop.f32.mrf.mxu0
        %v1091 = vadd.f32 0.0, %v1090
        %v1092 = vpop.f32.mrf.mxu0
        %1093 = vdwg.mxu0
        %v1094 = vmul.f32 %v1091, 0.17677669
        %v1095 = vsel %vm610, %v1094, -inf
        %1096 = vmax.xlane.f32.xlu0 %v1095
        %v1097 = vpop.xlane.xlu0 %1096
        %v1098 = vsub.f32 %v1094, %v1097
        %v1099 = vmul.f32 %v1098, 1.442695
        %v1100 = vpow.pop %v1099
        %v1101 = vsel %vm610, %v1100, 0.0
        %1102 = vadd.xlane.f32.xlu0 %v1101
        %v1103 = vpop.xlane.xlu0 %1102
        %v1104 = vrcp.pop %v1103
        %v1105 = vmul.f32 %v1100, %v1104
        %s1106 = scalar_lea.vmem %s523, 16 [#allocation4]
        %1107 = vst.msk [vmem:[%s1106] sm:$0xff] %vm610, %v1105
        %1108 = vrot.lane.b32.xlu0 %v604, 48
        %v1109 = vpop.permute.xlu0 %1108
        %v1112 = vsel %vm610, %v1105, 0
        %1114 = vmatprep.subr.mxu0 0.0
        %1115 = vmatpush1.msra.mxu0 0.0
        %1116 = vmatprep.subr.mxu0 0.0
        %1117 = vmatpush1.msra.mxu0 0.0
        %1118 = vmatprep.subr.mxu0 0.0
        %1119 = vmatpush1.msra.mxu0 0.0
        %1120 = vmatprep.subr.mxu0 0.0
        %1121 = vmatpush1.msra.mxu0 0.0
        %1122 = vmatprep.subr.mxu0 0.0
        %1123 = vmatpush1.msra.mxu0 0.0
        %1124 = vmatprep.subr.mxu0 0.0
        %1125 = vmatpush1.msra.mxu0 0.0
        %1126 = vmatprep.subr.mxu0 0.0
        %1127 = vmatpush1.msra.mxu0 0.0
        %1128 = vmatprep.subr.mxu0 0.0
        %1129 = vmatpush1.msra.mxu0 0.0
        %1130 = vmatprep.subr.mxu0 0.0
        %1131 = vmatpush1.msra.mxu0 0.0
        %1132 = vmatprep.subr.mxu0 0.0
        %1133 = vmatpush1.msra.mxu0 0.0
        %1134 = vmatprep.subr.mxu0 0.0
        %1135 = vmatpush1.msra.mxu0 0.0
        %1136 = vmatprep.subr.mxu0 0.0
        %1137 = vmatpush1.msra.mxu0 0.0
        %1138 = vmatprep.subr.mxu0 0.0
        %1139 = vmatpush1.msra.mxu0 0.0
        %1140 = vmatprep.subr.mxu0 0.0
        %1141 = vmatpush1.msra.mxu0 0.0
        %1142 = vmatprep.subr.mxu0 0.0
        %1143 = vmatpush1.msra.mxu0 0.0
        %1144 = vmatprep.subr.mxu0 0.0
        %1145 = vmatpush1.msra.mxu0 %v1109
        %1146 = vmatprep.subr.mxu0 0.0
        %1147 = vmatpush2.msra.mxu0 0.0
        %1148 = vmatprep.subr.mxu0 0.0
        %1149 = vmatpush2.msra.mxu0 0.0
        %1150 = vmatprep.subr.mxu0 0.0
        %1151 = vmatpush2.msra.mxu0 0.0
        %1152 = vmatprep.subr.mxu0 0.0
        %1153 = vmatpush2.msra.mxu0 0.0
        %1154 = vmatprep.subr.mxu0 0.0
        %1155 = vmatpush2.msra.mxu0 0.0
        %1156 = vmatprep.subr.mxu0 0.0
        %1157 = vmatpush2.msra.mxu0 0.0
        %1158 = vmatprep.subr.mxu0 0.0
        %1159 = vmatpush2.msra.mxu0 0.0
        %1160 = vmatprep.subr.mxu0 0.0
        %1161 = vmatpush2.msra.mxu0 0.0
        %1162 = vmatprep.subr.mxu0 0.0
        %1163 = vmatpush2.msra.mxu0 0.0
        %1164 = vmatprep.subr.mxu0 0.0
        %1165 = vmatpush2.msra.mxu0 0.0
        %1166 = vmatprep.subr.mxu0 0.0
        %1167 = vmatpush2.msra.mxu0 0.0
        %1168 = vmatprep.subr.mxu0 0.0
        %1169 = vmatpush2.msra.mxu0 0.0
        %1170 = vmatprep.subr.mxu0 0.0
        %1171 = vmatpush2.msra.mxu0 0.0
        %1172 = vmatprep.subr.mxu0 0.0
        %1173 = vmatpush2.msra.mxu0 0.0
        %1174 = vmatprep.subr.mxu0 0.0
        %1175 = vmatpush2.msra.mxu0 0.0
        %1176 = vmatprep.subr.mxu0 0.0
        %1177 = vmatpush2.msra.mxu0 0.0
        %1178 = vmatprep.mubr.f32.mxu0 0.0
        %1179 = vmatmul.mubr.f32.gmra.mxu0 %v1112
        %v1180 = vpop.f32.mrf.mxu0
        %v1181 = vadd.f32 0.0, %v1180
        %v1182 = vpop.f32.mrf.mxu0
        %1183 = vdwg.mxu0
        %1184 = vxpose.xlu0.b32.start [1/16] %v1105, 128
        %1185 = vxpose.xlu0.b32.cont [2/16] 0.0, 128
        %1186 = vxpose.xlu0.b32.cont [3/16] 0.0, 128
        %1187 = vxpose.xlu0.b32.cont [4/16] 0.0, 128
        %1188 = vxpose.xlu0.b32.cont [5/16] 0.0, 128
        %1189 = vxpose.xlu0.b32.cont [6/16] 0.0, 128
        %1190 = vxpose.xlu0.b32.cont [7/16] 0.0, 128
        %1191 = vxpose.xlu0.b32.cont [8/16] 0.0, 128
        %1192 = vxpose.xlu0.b32.cont [9/16] 0.0, 128
        %1193 = vxpose.xlu0.b32.cont [10/16] 0.0, 128
        %1194 = vxpose.xlu0.b32.cont [11/16] 0.0, 128
        %1195 = vxpose.xlu0.b32.cont [12/16] 0.0, 128
        %1196 = vxpose.xlu0.b32.cont [13/16] 0.0, 128
        %1197 = vxpose.xlu0.b32.cont [14/16] 0.0, 128
        %1198 = vxpose.xlu0.b32.cont [15/16] 0.0, 128
        %1199 = vxpose.xlu0.b32.end [16/16] 0.0, 128
        %v1200 = vpop.trf.xlu0
        %v1201 = vpop.trf.xlu0
        %v1202 = vpop.trf.xlu0
        %v1203 = vpop.trf.xlu0
        %v1204 = vpop.trf.xlu0
        %v1205 = vpop.trf.xlu0
        %v1206 = vpop.trf.xlu0
        %v1207 = vpop.trf.xlu0
        %v1208 = vpop.trf.xlu0
        %v1209 = vpop.trf.xlu0
        %v1210 = vpop.trf.xlu0
        %v1211 = vpop.trf.xlu0
        %v1212 = vpop.trf.xlu0
        %v1213 = vpop.trf.xlu0
        %v1214 = vpop.trf.xlu0
        %v1215 = vpop.trf.xlu0
        %1217 = vrot.lane.b32.xlu0 %v1200, 8
        %v1218 = vpop.permute.xlu0 %1217
        %v1220 = vsel %vm610, %v1105, %v1218
        %1221 = vrot.lane.b32.xlu0 %v604, 104
        %v1222 = vpop.permute.xlu0 %1221
        %1223 = vrot.lane.b32.xlu0 %v604, 72
        %v1224 = vpop.permute.xlu0 %1223
        %v1225 = vsel %vm610, %v1222, 0
        %v1227 = vsel %vm610, %v1224, 0
        %1229 = vmatprep.subr.mxu0 0.0
        %1230 = vmatpush1.xpose.msra.mxu0 0.0
        %1231 = vmatprep.subr.mxu0 0.0
        %1232 = vmatpush1.xpose.msra.mxu0 0.0
        %1233 = vmatprep.subr.mxu0 0.0
        %1234 = vmatpush1.xpose.msra.mxu0 0.0
        %1235 = vmatprep.subr.mxu0 0.0
        %1236 = vmatpush1.xpose.msra.mxu0 0.0
        %1237 = vmatprep.subr.mxu0 0.0
        %1238 = vmatpush1.xpose.msra.mxu0 0.0
        %1239 = vmatprep.subr.mxu0 0.0
        %1240 = vmatpush1.xpose.msra.mxu0 0.0
        %1241 = vmatprep.subr.mxu0 0.0
        %1242 = vmatpush1.xpose.msra.mxu0 0.0
        %1243 = vmatprep.subr.mxu0 0.0
        %1244 = vmatpush1.xpose.msra.mxu0 0.0
        %1245 = vmatprep.subr.mxu0 0.0
        %1246 = vmatpush1.xpose.msra.mxu0 0.0
        %1247 = vmatprep.subr.mxu0 0.0
        %1248 = vmatpush1.xpose.msra.mxu0 0.0
        %1249 = vmatprep.subr.mxu0 0.0
        %1250 = vmatpush1.xpose.msra.mxu0 0.0
        %1251 = vmatprep.subr.mxu0 0.0
        %1252 = vmatpush1.xpose.msra.mxu0 0.0
        %1253 = vmatprep.subr.mxu0 0.0
        %1254 = vmatpush1.xpose.msra.mxu0 0.0
        %1255 = vmatprep.subr.mxu0 0.0
        %1256 = vmatpush1.xpose.msra.mxu0 0.0
        %1257 = vmatprep.subr.mxu0 0.0
        %1258 = vmatpush1.xpose.msra.mxu0 0.0
        %1259 = vmatprep.subr.mxu0 0.0
        %1260 = vmatpush1.xpose.msra.mxu0 %v1227
        %1261 = vmatprep.subr.mxu0 0.0
        %1262 = vmatpush2.xpose.msra.mxu0 0.0
        %1263 = vmatprep.subr.mxu0 0.0
        %1264 = vmatpush2.xpose.msra.mxu0 0.0
        %1265 = vmatprep.subr.mxu0 0.0
        %1266 = vmatpush2.xpose.msra.mxu0 0.0
        %1267 = vmatprep.subr.mxu0 0.0
        %1268 = vmatpush2.xpose.msra.mxu0 0.0
        %1269 = vmatprep.subr.mxu0 0.0
        %1270 = vmatpush2.xpose.msra.mxu0 0.0
        %1271 = vmatprep.subr.mxu0 0.0
        %1272 = vmatpush2.xpose.msra.mxu0 0.0
        %1273 = vmatprep.subr.mxu0 0.0
        %1274 = vmatpush2.xpose.msra.mxu0 0.0
        %1275 = vmatprep.subr.mxu0 0.0
        %1276 = vmatpush2.xpose.msra.mxu0 0.0
        %1277 = vmatprep.subr.mxu0 0.0
        %1278 = vmatpush2.xpose.msra.mxu0 0.0
        %1279 = vmatprep.subr.mxu0 0.0
        %1280 = vmatpush2.xpose.msra.mxu0 0.0
        %1281 = vmatprep.subr.mxu0 0.0
        %1282 = vmatpush2.xpose.msra.mxu0 0.0
        %1283 = vmatprep.subr.mxu0 0.0
        %1284 = vmatpush2.xpose.msra.mxu0 0.0
        %1285 = vmatprep.subr.mxu0 0.0
        %1286 = vmatpush2.xpose.msra.mxu0 0.0
        %1287 = vmatprep.subr.mxu0 0.0
        %1288 = vmatpush2.xpose.msra.mxu0 0.0
        %1289 = vmatprep.subr.mxu0 0.0
        %1290 = vmatpush2.xpose.msra.mxu0 0.0
        %1291 = vmatprep.subr.mxu0 0.0
        %1292 = vmatpush2.xpose.msra.mxu0 0.0
        %1293 = vmatprep.mubr.f32.mxu0 0.0
        %1294 = vmatmul.mubr.f32.gmra.mxu0 %v1225
        %v1295 = vpop.f32.mrf.mxu0
        %v1296 = vadd.f32 0.0, %v1295
        %v1297 = vpop.f32.mrf.mxu0
        %1298 = vdwg.mxu0
        %v1299 = vmul.f32 %v1296, 0.17677669
        %v1300 = vsel %vm610, %v1299, -inf
        %1301 = vmax.xlane.f32.xlu0 %v1300
        %v1302 = vpop.xlane.xlu0 %1301
        %v1303 = vsub.f32 %v1299, %v1302
        %v1304 = vmul.f32 %v1303, 1.442695
        %v1305 = vpow.pop %v1304
        %v1306 = vsel %vm610, %v1305, 0.0
        %1307 = vadd.xlane.f32.xlu0 %v1306
        %v1308 = vpop.xlane.xlu0 %1307
        %v1309 = vrcp.pop %v1308
        %v1310 = vmul.f32 %v1305, %v1309
        %s1311 = scalar_lea.vmem %s523, 24 [#allocation4]
        %1312 = vst.msk [vmem:[%s1311] sm:$0xff] %vm610, %v1310
        %1313 = vrot.lane.b32.xlu0 %v604, 40
        %v1314 = vpop.permute.xlu0 %1313
        %v1317 = vsel %vm610, %v1310, 0
        %1319 = vmatprep.subr.mxu0 0.0
        %1320 = vmatpush1.msra.mxu0 0.0
        %1321 = vmatprep.subr.mxu0 0.0
        %1322 = vmatpush1.msra.mxu0 0.0
        %1323 = vmatprep.subr.mxu0 0.0
        %1324 = vmatpush1.msra.mxu0 0.0
        %1325 = vmatprep.subr.mxu0 0.0
        %1326 = vmatpush1.msra.mxu0 0.0
        %1327 = vmatprep.subr.mxu0 0.0
        %1328 = vmatpush1.msra.mxu0 0.0
        %1329 = vmatprep.subr.mxu0 0.0
        %1330 = vmatpush1.msra.mxu0 0.0
        %1331 = vmatprep.subr.mxu0 0.0
        %1332 = vmatpush1.msra.mxu0 0.0
        %1333 = vmatprep.subr.mxu0 0.0
        %1334 = vmatpush1.msra.mxu0 0.0
        %1335 = vmatprep.subr.mxu0 0.0
        %1336 = vmatpush1.msra.mxu0 0.0
        %1337 = vmatprep.subr.mxu0 0.0
        %1338 = vmatpush1.msra.mxu0 0.0
        %1339 = vmatprep.subr.mxu0 0.0
        %1340 = vmatpush1.msra.mxu0 0.0
        %1341 = vmatprep.subr.mxu0 0.0
        %1342 = vmatpush1.msra.mxu0 0.0
        %1343 = vmatprep.subr.mxu0 0.0
        %1344 = vmatpush1.msra.mxu0 0.0
        %1345 = vmatprep.subr.mxu0 0.0
        %1346 = vmatpush1.msra.mxu0 0.0
        %1347 = vmatprep.subr.mxu0 0.0
        %1348 = vmatpush1.msra.mxu0 0.0
        %1349 = vmatprep.subr.mxu0 0.0
        %1350 = vmatpush1.msra.mxu0 %v1314
        %1351 = vmatprep.subr.mxu0 0.0
        %1352 = vmatpush2.msra.mxu0 0.0
        %1353 = vmatprep.subr.mxu0 0.0
        %1354 = vmatpush2.msra.mxu0 0.0
        %1355 = vmatprep.subr.mxu0 0.0
        %1356 = vmatpush2.msra.mxu0 0.0
        %1357 = vmatprep.subr.mxu0 0.0
        %1358 = vmatpush2.msra.mxu0 0.0
        %1359 = vmatprep.subr.mxu0 0.0
        %1360 = vmatpush2.msra.mxu0 0.0
        %1361 = vmatprep.subr.mxu0 0.0
        %1362 = vmatpush2.msra.mxu0 0.0
        %1363 = vmatprep.subr.mxu0 0.0
        %1364 = vmatpush2.msra.mxu0 0.0
        %1365 = vmatprep.subr.mxu0 0.0
        %1366 = vmatpush2.msra.mxu0 0.0
        %1367 = vmatprep.subr.mxu0 0.0
        %1368 = vmatpush2.msra.mxu0 0.0
        %1369 = vmatprep.subr.mxu0 0.0
        %1370 = vmatpush2.msra.mxu0 0.0
        %1371 = vmatprep.subr.mxu0 0.0
        %1372 = vmatpush2.msra.mxu0 0.0
        %1373 = vmatprep.subr.mxu0 0.0
        %1374 = vmatpush2.msra.mxu0 0.0
        %1375 = vmatprep.subr.mxu0 0.0
        %1376 = vmatpush2.msra.mxu0 0.0
        %1377 = vmatprep.subr.mxu0 0.0
        %1378 = vmatpush2.msra.mxu0 0.0
        %1379 = vmatprep.subr.mxu0 0.0
        %1380 = vmatpush2.msra.mxu0 0.0
        %1381 = vmatprep.subr.mxu0 0.0
        %1382 = vmatpush2.msra.mxu0 0.0
        %1383 = vmatprep.mubr.f32.mxu0 0.0
        %1384 = vmatmul.mubr.f32.gmra.mxu0 %v1317
        %v1385 = vpop.f32.mrf.mxu0
        %v1386 = vadd.f32 0.0, %v1385
        %v1387 = vpop.f32.mrf.mxu0
        %1388 = vdwg.mxu0
        %1389 = vxpose.xlu0.b32.start [1/16] %v1310, 128
        %1390 = vxpose.xlu0.b32.cont [2/16] 0.0, 128
        %1391 = vxpose.xlu0.b32.cont [3/16] 0.0, 128
        %1392 = vxpose.xlu0.b32.cont [4/16] 0.0, 128
        %1393 = vxpose.xlu0.b32.cont [5/16] 0.0, 128
        %1394 = vxpose.xlu0.b32.cont [6/16] 0.0, 128
        %1395 = vxpose.xlu0.b32.cont [7/16] 0.0, 128
        %1396 = vxpose.xlu0.b32.cont [8/16] 0.0, 128
        %1397 = vxpose.xlu0.b32.cont [9/16] 0.0, 128
        %1398 = vxpose.xlu0.b32.cont [10/16] 0.0, 128
        %1399 = vxpose.xlu0.b32.cont [11/16] 0.0, 128
        %1400 = vxpose.xlu0.b32.cont [12/16] 0.0, 128
        %1401 = vxpose.xlu0.b32.cont [13/16] 0.0, 128
        %1402 = vxpose.xlu0.b32.cont [14/16] 0.0, 128
        %1403 = vxpose.xlu0.b32.cont [15/16] 0.0, 128
        %1404 = vxpose.xlu0.b32.end [16/16] 0.0, 128
        %v1405 = vpop.trf.xlu0
        %v1406 = vpop.trf.xlu0
        %v1407 = vpop.trf.xlu0
        %v1408 = vpop.trf.xlu0
        %v1409 = vpop.trf.xlu0
        %v1410 = vpop.trf.xlu0
        %v1411 = vpop.trf.xlu0
        %v1412 = vpop.trf.xlu0
        %v1413 = vpop.trf.xlu0
        %v1414 = vpop.trf.xlu0
        %v1415 = vpop.trf.xlu0
        %v1416 = vpop.trf.xlu0
        %v1417 = vpop.trf.xlu0
        %v1418 = vpop.trf.xlu0
        %v1419 = vpop.trf.xlu0
        %v1420 = vpop.trf.xlu0
        %1422 = vrot.lane.b32.xlu0 %v1405, 8
        %v1423 = vpop.permute.xlu0 %1422
        %v1425 = vsel %vm610, %v1310, %v1423
        %1427 = vrot.lane.b32.xlu0 %v976, 8
        %v1428 = vpop.permute.xlu0 %1427
        %1431 = vrot.lane.b32.xlu0 %v1181, 16
        %v1432 = vpop.permute.xlu0 %1431
        %1435 = vrot.lane.b32.xlu0 %v1386, 24
        %v1436 = vpop.permute.xlu0 %1435
        %v1438 = vsel %vm610, %v771, %v1428
        %vm1439 = vcmask 130048
        %v1440 = vsel %vm1439, %v1438, %v1432
        %vm1441 = vcmask 195584
        %v1442 = vsel %vm1441, %v1440, %v1436
        %v1443 = vld [vmem:[%s2] sm:$0xff]
        %v1444 = vld [vmem:[%s2 + $0x8] sm:$0xff]
        %v1445 = vld [vmem:[%s2 + $0x10] sm:$0xff]
        %v1446 = vld [vmem:[%s2 + $0x18] sm:$0xff]
        %v1447 = vld [vmem:[%s3] sm:$0x1]
        %v1449 = vlaneseq
        %v1450 = vshrl.u32 %v1449, 7
        %v1451 = vsub.s32 0, %v1450
        %v1452 = vrot.slane %v1447, %v1451
        %v1455 = vsel %vm533, %v1442, 0
        %1457 = vmatprep.subr.mxu0 0.0
        %1458 = vmatpush1.msra.mxu0 0.0
        %1459 = vmatprep.subr.mxu0 0.0
        %1460 = vmatpush1.msra.mxu0 0.0
        %1461 = vmatprep.subr.mxu0 0.0
        %1462 = vmatpush1.msra.mxu0 0.0
        %1463 = vmatprep.subr.mxu0 0.0
        %1464 = vmatpush1.msra.mxu0 0.0
        %1465 = vmatprep.subr.mxu0 0.0
        %1466 = vmatpush1.msra.mxu0 0.0
        %1467 = vmatprep.subr.mxu0 0.0
        %1468 = vmatpush1.msra.mxu0 0.0
        %1469 = vmatprep.subr.mxu0 0.0
        %1470 = vmatpush1.msra.mxu0 0.0
        %1471 = vmatprep.subr.mxu0 0.0
        %1472 = vmatpush1.msra.mxu0 0.0
        %1473 = vmatprep.subr.mxu0 0.0
        %1474 = vmatpush1.msra.mxu0 0.0
        %1475 = vmatprep.subr.mxu0 0.0
        %1476 = vmatpush1.msra.mxu0 0.0
        %1477 = vmatprep.subr.mxu0 0.0
        %1478 = vmatpush1.msra.mxu0 0.0
        %1479 = vmatprep.subr.mxu0 0.0
        %1480 = vmatpush1.msra.mxu0 0.0
        %1481 = vmatprep.subr.mxu0 0.0
        %1482 = vmatpush1.msra.mxu0 %v1446
        %1483 = vmatprep.subr.mxu0 0.0
        %1484 = vmatpush1.msra.mxu0 %v1445
        %1485 = vmatprep.subr.mxu0 0.0
        %1486 = vmatpush1.msra.mxu0 %v1444
        %1487 = vmatprep.subr.mxu0 0.0
        %1488 = vmatpush1.msra.mxu0 %v1443
        %1489 = vmatprep.subr.mxu0 0.0
        %1490 = vmatpush2.msra.mxu0 0.0
        %1491 = vmatprep.subr.mxu0 0.0
        %1492 = vmatpush2.msra.mxu0 0.0
        %1493 = vmatprep.subr.mxu0 0.0
        %1494 = vmatpush2.msra.mxu0 0.0
        %1495 = vmatprep.subr.mxu0 0.0
        %1496 = vmatpush2.msra.mxu0 0.0
        %1497 = vmatprep.subr.mxu0 0.0
        %1498 = vmatpush2.msra.mxu0 0.0
        %1499 = vmatprep.subr.mxu0 0.0
        %1500 = vmatpush2.msra.mxu0 0.0
        %1501 = vmatprep.subr.mxu0 0.0
        %1502 = vmatpush2.msra.mxu0 0.0
        %1503 = vmatprep.subr.mxu0 0.0
        %1504 = vmatpush2.msra.mxu0 0.0
        %1505 = vmatprep.subr.mxu0 0.0
        %1506 = vmatpush2.msra.mxu0 0.0
        %1507 = vmatprep.subr.mxu0 0.0
        %1508 = vmatpush2.msra.mxu0 0.0
        %1509 = vmatprep.subr.mxu0 0.0
        %1510 = vmatpush2.msra.mxu0 0.0
        %1511 = vmatprep.subr.mxu0 0.0
        %1512 = vmatpush2.msra.mxu0 0.0
        %1513 = vmatprep.subr.mxu0 0.0
        %1514 = vmatpush2.msra.mxu0 0.0
        %1515 = vmatprep.subr.mxu0 0.0
        %1516 = vmatpush2.msra.mxu0 0.0
        %1517 = vmatprep.subr.mxu0 0.0
        %1518 = vmatpush2.msra.mxu0 0.0
        %1519 = vmatprep.subr.mxu0 0.0
        %1520 = vmatpush2.msra.mxu0 0.0
        %1521 = vmatprep.mubr.f32.mxu0 0.0
        %1522 = vmatmul.mubr.f32.gmra.mxu0 %v1455
        %v1523 = vpop.f32.mrf.mxu0
        %v1524 = vadd.f32 %v1452, %v1523
        %v1525 = vpop.f32.mrf.mxu0
        %1526 = vdwg.mxu0
        %v1527 = vadd.f32 %v1524, %v528
        %v1528 = vld [vmem:[%s4] sm:$0x1]
        %v1529 = vld [vmem:[%s5] sm:$0x1]
        %v1530 = vsel %vm533, %v1527, 0.0
        %1531 = vadd.xlane.f32.xlu0 %v1530
        %v1532 = vpop.xlane.xlu0 %1531
        %v1533 = vrcp.pop 32.0
        %v1534 = vmul.f32 %v1532, %v1533
        %v1535 = vsub.f32 %v1527, %v1534
        %v1536 = vmul.f32 %v1535, %v1535
        %v1537 = vsel %vm533, %v1536, 0.0
        %1538 = vadd.xlane.f32.xlu0 %v1537
        %v1539 = vpop.xlane.xlu0 %1538
        %v1540 = vrcp.pop 31.0
        %v1541 = vmul.f32 %v1539, %v1540
        %v1542 = vrsqrt.pop %v1541
        %v1543 = vmul.f32 %v1541, %v1542
        %vm1544 = vcmp.eq.f32.partialorder %v1541, inf
        %v1545 = vsel %vm1544, %v1541, %v1543
        %vm1546 = vcmp.eq.f32.partialorder %v1541, 0.0
        %v1547 = vand.u32 %v1541, 2147483648
        %v1548 = vsel %vm1546, %v1547, %v1545
        %v1549 = vadd.f32 %v1548, 0.001
        %v1550 = vrcp.pop %v1549
        %v1551 = vmul.f32 %v1535, %v1550
        %v1553 = vlaneseq
        %v1554 = vshrl.u32 %v1553, 7
        %v1555 = vsub.s32 0, %v1554
        %v1556 = vrot.slane %v1528, %v1555
        %v1558 = vmul.f32 %v1551, %v1556
        %v1560 = vlaneseq
        %v1561 = vshrl.u32 %v1560, 7
        %v1562 = vsub.s32 0, %v1561
        %v1563 = vrot.slane %v1529, %v1562
        %v1565 = vadd.f32 %v1558, %v1563
        %1567 = vrot.lane.b32.xlu0 %v1015, 16
        %v1568 = vpop.permute.xlu0 %1567
        %1571 = vrot.lane.b32.xlu0 %v1220, 32
        %v1572 = vpop.permute.xlu0 %1571
        %1575 = vrot.lane.b32.xlu0 %v1425, 48
        %v1576 = vpop.permute.xlu0 %1575
        %v1578 = vsel %vm1439, %v810, %v1568
        %v1579 = vsel %vm533, %v1578, %v1572
        %vm1580 = vcmask 392192
        %v1581 = vsel %vm1580, %v1579, %v1576
        %v1582 = vld [vmem:[%s6] sm:$0xff]
        %v1583 = vld [vmem:[%s6 + $0x8] sm:$0xff]
        %v1584 = vld [vmem:[%s6 + $0x10] sm:$0xff]
        %v1585 = vld [vmem:[%s6 + $0x18] sm:$0xff]
        %v1586 = vld [vmem:[%s6 + $0x20] sm:$0xff]
        %v1587 = vld [vmem:[%s6 + $0x28] sm:$0xff]
        %v1588 = vld [vmem:[%s6 + $0x30] sm:$0xff]
        %v1589 = vld [vmem:[%s6 + $0x38] sm:$0xff]
        %v1590 = vld [vmem:[%s7] sm:$0xff]
        %v1591 = vld [vmem:[%s7 + $0x8] sm:$0xff]
        %v1592 = vld [vmem:[%s7 + $0x10] sm:$0xff]
        %v1593 = vld [vmem:[%s7 + $0x18] sm:$0xff]
        %v1595 = vsel %vm533, %v1565, 0
        %1597 = vmatprep.subr.mxu0 0.0
        %1598 = vmatpush1.msra.mxu0 0.0
        %1599 = vmatprep.subr.mxu0 0.0
        %1600 = vmatpush1.msra.mxu0 0.0
        %1601 = vmatprep.subr.mxu0 0.0
        %1602 = vmatpush1.msra.mxu0 0.0
        %1603 = vmatprep.subr.mxu0 0.0
        %1604 = vmatpush1.msra.mxu0 0.0
        %1605 = vmatprep.subr.mxu0 0.0
        %1606 = vmatpush1.msra.mxu0 0.0
        %1607 = vmatprep.subr.mxu0 0.0
        %1608 = vmatpush1.msra.mxu0 0.0
        %1609 = vmatprep.subr.mxu0 0.0
        %1610 = vmatpush1.msra.mxu0 0.0
        %1611 = vmatprep.subr.mxu0 0.0
        %1612 = vmatpush1.msra.mxu0 0.0
        %1613 = vmatprep.subr.mxu0 0.0
        %1614 = vmatpush1.msra.mxu0 0.0
        %1615 = vmatprep.subr.mxu0 0.0
        %1616 = vmatpush1.msra.mxu0 0.0
        %1617 = vmatprep.subr.mxu0 0.0
        %1618 = vmatpush1.msra.mxu0 0.0
        %1619 = vmatprep.subr.mxu0 0.0
        %1620 = vmatpush1.msra.mxu0 0.0
        %1621 = vmatprep.subr.mxu0 0.0
        %1622 = vmatpush1.msra.mxu0 %v1593
        %1623 = vmatprep.subr.mxu0 0.0
        %1624 = vmatpush1.msra.mxu0 %v1592
        %1625 = vmatprep.subr.mxu0 0.0
        %1626 = vmatpush1.msra.mxu0 %v1591
        %1627 = vmatprep.subr.mxu0 0.0
        %1628 = vmatpush1.msra.mxu0 %v1590
        %1629 = vmatprep.subr.mxu0 0.0
        %1630 = vmatpush2.msra.mxu0 0.0
        %1631 = vmatprep.subr.mxu0 0.0
        %1632 = vmatpush2.msra.mxu0 0.0
        %1633 = vmatprep.subr.mxu0 0.0
        %1634 = vmatpush2.msra.mxu0 0.0
        %1635 = vmatprep.subr.mxu0 0.0
        %1636 = vmatpush2.msra.mxu0 0.0
        %1637 = vmatprep.subr.mxu0 0.0
        %1638 = vmatpush2.msra.mxu0 0.0
        %1639 = vmatprep.subr.mxu0 0.0
        %1640 = vmatpush2.msra.mxu0 0.0
        %1641 = vmatprep.subr.mxu0 0.0
        %1642 = vmatpush2.msra.mxu0 0.0
        %1643 = vmatprep.subr.mxu0 0.0
        %1644 = vmatpush2.msra.mxu0 0.0
        %1645 = vmatprep.subr.mxu0 0.0
        %1646 = vmatpush2.msra.mxu0 0.0
        %1647 = vmatprep.subr.mxu0 0.0
        %1648 = vmatpush2.msra.mxu0 0.0
        %1649 = vmatprep.subr.mxu0 0.0
        %1650 = vmatpush2.msra.mxu0 0.0
        %1651 = vmatprep.subr.mxu0 0.0
        %1652 = vmatpush2.msra.mxu0 0.0
        %1653 = vmatprep.subr.mxu0 0.0
        %1654 = vmatpush2.msra.mxu0 0.0
        %1655 = vmatprep.subr.mxu0 0.0
        %1656 = vmatpush2.msra.mxu0 0.0
        %1657 = vmatprep.subr.mxu0 0.0
        %1658 = vmatpush2.msra.mxu0 0.0
        %1659 = vmatprep.subr.mxu0 0.0
        %1660 = vmatpush2.msra.mxu0 0.0
        %1661 = vmatprep.mubr.f32.mxu0 0.0
        %1662 = vmatmul.mubr.f32.gmra.mxu0 %v1595
        %v1663 = vpop.f32.mrf.mxu0
        %v1664 = vadd.f32 0.0, %v1663
        %v1665 = vpop.f32.mrf.mxu0
        %1666 = vdwg.mxu0
        %vm1667 = vcmask 523264
        %v1669 = vsel %vm1667, %v1581, 0
        %1671 = vmatprep.subr.mxu0 0.0
        %1672 = vmatpush1.msra.mxu0 0.0
        %1673 = vmatprep.subr.mxu0 0.0
        %1674 = vmatpush1.msra.mxu0 0.0
        %1675 = vmatprep.subr.mxu0 0.0
        %1676 = vmatpush1.msra.mxu0 0.0
        %1677 = vmatprep.subr.mxu0 0.0
        %1678 = vmatpush1.msra.mxu0 0.0
        %1679 = vmatprep.subr.mxu0 0.0
        %1680 = vmatpush1.msra.mxu0 0.0
        %1681 = vmatprep.subr.mxu0 0.0
        %1682 = vmatpush1.msra.mxu0 0.0
        %1683 = vmatprep.subr.mxu0 0.0
        %1684 = vmatpush1.msra.mxu0 0.0
        %1685 = vmatprep.subr.mxu0 0.0
        %1686 = vmatpush1.msra.mxu0 0.0
        %1687 = vmatprep.subr.mxu0 0.0
        %1688 = vmatpush1.msra.mxu0 %v1589
        %1689 = vmatprep.subr.mxu0 0.0
        %1690 = vmatpush1.msra.mxu0 %v1588
        %1691 = vmatprep.subr.mxu0 0.0
        %1692 = vmatpush1.msra.mxu0 %v1587
        %1693 = vmatprep.subr.mxu0 0.0
        %1694 = vmatpush1.msra.mxu0 %v1586
        %1695 = vmatprep.subr.mxu0 0.0
        %1696 = vmatpush1.msra.mxu0 %v1585
        %1697 = vmatprep.subr.mxu0 0.0
        %1698 = vmatpush1.msra.mxu0 %v1584
        %1699 = vmatprep.subr.mxu0 0.0
        %1700 = vmatpush1.msra.mxu0 %v1583
        %1701 = vmatprep.subr.mxu0 0.0
        %1702 = vmatpush1.msra.mxu0 %v1582
        %1703 = vmatprep.subr.mxu0 0.0
        %1704 = vmatpush2.msra.mxu0 0.0
        %1705 = vmatprep.subr.mxu0 0.0
        %1706 = vmatpush2.msra.mxu0 0.0
        %1707 = vmatprep.subr.mxu0 0.0
        %1708 = vmatpush2.msra.mxu0 0.0
        %1709 = vmatprep.subr.mxu0 0.0
        %1710 = vmatpush2.msra.mxu0 0.0
        %1711 = vmatprep.subr.mxu0 0.0
        %1712 = vmatpush2.msra.mxu0 0.0
        %1713 = vmatprep.subr.mxu0 0.0
        %1714 = vmatpush2.msra.mxu0 0.0
        %1715 = vmatprep.subr.mxu0 0.0
        %1716 = vmatpush2.msra.mxu0 0.0
        %1717 = vmatprep.subr.mxu0 0.0
        %1718 = vmatpush2.msra.mxu0 0.0
        %1719 = vmatprep.subr.mxu0 0.0
        %1720 = vmatpush2.msra.mxu0 0.0
        %1721 = vmatprep.subr.mxu0 0.0
        %1722 = vmatpush2.msra.mxu0 0.0
        %1723 = vmatprep.subr.mxu0 0.0
        %1724 = vmatpush2.msra.mxu0 0.0
        %1725 = vmatprep.subr.mxu0 0.0
        %1726 = vmatpush2.msra.mxu0 0.0
        %1727 = vmatprep.subr.mxu0 0.0
        %1728 = vmatpush2.msra.mxu0 0.0
        %1729 = vmatprep.subr.mxu0 0.0
        %1730 = vmatpush2.msra.mxu0 0.0
        %1731 = vmatprep.subr.mxu0 0.0
        %1732 = vmatpush2.msra.mxu0 0.0
        %1733 = vmatprep.subr.mxu0 0.0
        %1734 = vmatpush2.msra.mxu0 0.0
        %1735 = vmatprep.mubr.f32.mxu0 0.0
        %1736 = vmatmul.mubr.f32.gmra.mxu0 %v1669
        %v1737 = vpop.f32.mrf.mxu0
        %v1738 = vadd.f32 %v1664, %v1737
        %v1739 = vpop.f32.mrf.mxu0
        %1740 = vdwg.mxu0
        %v1741 = vld [vmem:[%s8] sm:$0x1]
        %v1743 = vlaneseq
        %v1744 = vshrl.u32 %v1743, 7
        %v1745 = vsub.s32 0, %v1744
        %v1746 = vrot.slane %v1741, %v1745
        %v1748 = vadd.f32 %v1738, %v1746
        %v1749 = vld [vmem:[%s9] sm:$0xff]
        %v1750 = vld [vmem:[%s9 + $0x8] sm:$0xff]
        %v1751 = vld [vmem:[%s9 + $0x10] sm:$0xff]
        %v1752 = vld [vmem:[%s9 + $0x18] sm:$0xff]
        %v1753 = vld [vmem:[%s10] sm:$0x1]
        %v1755 = vlaneseq
        %v1756 = vshrl.u32 %v1755, 7
        %v1757 = vsub.s32 0, %v1756
        %v1758 = vrot.slane %v1753, %v1757
        %v1761 = vsel %vm533, %v1748, 0
        %1763 = vmatprep.subr.mxu0 0.0
        %1764 = vmatpush1.msra.mxu0 0.0
        %1765 = vmatprep.subr.mxu0 0.0
        %1766 = vmatpush1.msra.mxu0 0.0
        %1767 = vmatprep.subr.mxu0 0.0
        %1768 = vmatpush1.msra.mxu0 0.0
        %1769 = vmatprep.subr.mxu0 0.0
        %1770 = vmatpush1.msra.mxu0 0.0
        %1771 = vmatprep.subr.mxu0 0.0
        %1772 = vmatpush1.msra.mxu0 0.0
        %1773 = vmatprep.subr.mxu0 0.0
        %1774 = vmatpush1.msra.mxu0 0.0
        %1775 = vmatprep.subr.mxu0 0.0
        %1776 = vmatpush1.msra.mxu0 0.0
        %1777 = vmatprep.subr.mxu0 0.0
        %1778 = vmatpush1.msra.mxu0 0.0
        %1779 = vmatprep.subr.mxu0 0.0
        %1780 = vmatpush1.msra.mxu0 0.0
        %1781 = vmatprep.subr.mxu0 0.0
        %1782 = vmatpush1.msra.mxu0 0.0
        %1783 = vmatprep.subr.mxu0 0.0
        %1784 = vmatpush1.msra.mxu0 0.0
        %1785 = vmatprep.subr.mxu0 0.0
        %1786 = vmatpush1.msra.mxu0 0.0
        %1787 = vmatprep.subr.mxu0 0.0
        %1788 = vmatpush1.msra.mxu0 %v1752
        %1789 = vmatprep.subr.mxu0 0.0
        %1790 = vmatpush1.msra.mxu0 %v1751
        %1791 = vmatprep.subr.mxu0 0.0
        %1792 = vmatpush1.msra.mxu0 %v1750
        %1793 = vmatprep.subr.mxu0 0.0
        %1794 = vmatpush1.msra.mxu0 %v1749
        %1795 = vmatprep.subr.mxu0 0.0
        %1796 = vmatpush2.msra.mxu0 0.0
        %1797 = vmatprep.subr.mxu0 0.0
        %1798 = vmatpush2.msra.mxu0 0.0
        %1799 = vmatprep.subr.mxu0 0.0
        %1800 = vmatpush2.msra.mxu0 0.0
        %1801 = vmatprep.subr.mxu0 0.0
        %1802 = vmatpush2.msra.mxu0 0.0
        %1803 = vmatprep.subr.mxu0 0.0
        %1804 = vmatpush2.msra.mxu0 0.0
        %1805 = vmatprep.subr.mxu0 0.0
        %1806 = vmatpush2.msra.mxu0 0.0
        %1807 = vmatprep.subr.mxu0 0.0
        %1808 = vmatpush2.msra.mxu0 0.0
        %1809 = vmatprep.subr.mxu0 0.0
        %1810 = vmatpush2.msra.mxu0 0.0
        %1811 = vmatprep.subr.mxu0 0.0
        %1812 = vmatpush2.msra.mxu0 0.0
        %1813 = vmatprep.subr.mxu0 0.0
        %1814 = vmatpush2.msra.mxu0 0.0
        %1815 = vmatprep.subr.mxu0 0.0
        %1816 = vmatpush2.msra.mxu0 0.0
        %1817 = vmatprep.subr.mxu0 0.0
        %1818 = vmatpush2.msra.mxu0 0.0
        %1819 = vmatprep.subr.mxu0 0.0
        %1820 = vmatpush2.msra.mxu0 0.0
        %1821 = vmatprep.subr.mxu0 0.0
        %1822 = vmatpush2.msra.mxu0 0.0
        %1823 = vmatprep.subr.mxu0 0.0
        %1824 = vmatpush2.msra.mxu0 0.0
        %1825 = vmatprep.subr.mxu0 0.0
        %1826 = vmatpush2.msra.mxu0 0.0
        %1827 = vmatprep.mubr.f32.mxu0 0.0
        %1828 = vmatmul.mubr.f32.gmra.mxu0 %v1761
        %v1829 = vpop.f32.mrf.mxu0
        %v1830 = vadd.f32 %v1758, %v1829
        %v1831 = vpop.f32.mrf.mxu0
        %1832 = vdwg.mxu0
        %v1833 = vmax.f32 %v1830, 0.0
        %v1834 = vld [vmem:[%s11] sm:$0xff]
        %v1835 = vld [vmem:[%s11 + $0x8] sm:$0xff]
        %v1836 = vld [vmem:[%s11 + $0x10] sm:$0xff]
        %v1837 = vld [vmem:[%s11 + $0x18] sm:$0xff]
        %v1838 = vld [vmem:[%s11 + $0x20] sm:$0xff]
        %v1839 = vld [vmem:[%s11 + $0x28] sm:$0xff]
        %v1840 = vld [vmem:[%s11 + $0x30] sm:$0xff]
        %v1841 = vld [vmem:[%s11 + $0x38] sm:$0xff]
        %v1842 = vld [vmem:[%s12] sm:$0x1]
        %v1844 = vlaneseq
        %v1845 = vshrl.u32 %v1844, 7
        %v1846 = vsub.s32 0, %v1845
        %v1847 = vrot.slane %v1842, %v1846
        %v1850 = vsel %vm1667, %v1833, 0
        %1852 = vmatprep.subr.mxu0 0.0
        %1853 = vmatpush1.msra.mxu0 0.0
        %1854 = vmatprep.subr.mxu0 0.0
        %1855 = vmatpush1.msra.mxu0 0.0
        %1856 = vmatprep.subr.mxu0 0.0
        %1857 = vmatpush1.msra.mxu0 0.0
        %1858 = vmatprep.subr.mxu0 0.0
        %1859 = vmatpush1.msra.mxu0 0.0
        %1860 = vmatprep.subr.mxu0 0.0
        %1861 = vmatpush1.msra.mxu0 0.0
        %1862 = vmatprep.subr.mxu0 0.0
        %1863 = vmatpush1.msra.mxu0 0.0
        %1864 = vmatprep.subr.mxu0 0.0
        %1865 = vmatpush1.msra.mxu0 0.0
        %1866 = vmatprep.subr.mxu0 0.0
        %1867 = vmatpush1.msra.mxu0 0.0
        %1868 = vmatprep.subr.mxu0 0.0
        %1869 = vmatpush1.msra.mxu0 %v1841
        %1870 = vmatprep.subr.mxu0 0.0
        %1871 = vmatpush1.msra.mxu0 %v1840
        %1872 = vmatprep.subr.mxu0 0.0
        %1873 = vmatpush1.msra.mxu0 %v1839
        %1874 = vmatprep.subr.mxu0 0.0
        %1875 = vmatpush1.msra.mxu0 %v1838
        %1876 = vmatprep.subr.mxu0 0.0
        %1877 = vmatpush1.msra.mxu0 %v1837
        %1878 = vmatprep.subr.mxu0 0.0
        %1879 = vmatpush1.msra.mxu0 %v1836
        %1880 = vmatprep.subr.mxu0 0.0
        %1881 = vmatpush1.msra.mxu0 %v1835
        %1882 = vmatprep.subr.mxu0 0.0
        %1883 = vmatpush1.msra.mxu0 %v1834
        %1884 = vmatprep.subr.mxu0 0.0
        %1885 = vmatpush2.msra.mxu0 0.0
        %1886 = vmatprep.subr.mxu0 0.0
        %1887 = vmatpush2.msra.mxu0 0.0
        %1888 = vmatprep.subr.mxu0 0.0
        %1889 = vmatpush2.msra.mxu0 0.0
        %1890 = vmatprep.subr.mxu0 0.0
        %1891 = vmatpush2.msra.mxu0 0.0
        %1892 = vmatprep.subr.mxu0 0.0
        %1893 = vmatpush2.msra.mxu0 0.0
        %1894 = vmatprep.subr.mxu0 0.0
        %1895 = vmatpush2.msra.mxu0 0.0
        %1896 = vmatprep.subr.mxu0 0.0
        %1897 = vmatpush2.msra.mxu0 0.0
        %1898 = vmatprep.subr.mxu0 0.0
        %1899 = vmatpush2.msra.mxu0 0.0
        %1900 = vmatprep.subr.mxu0 0.0
        %1901 = vmatpush2.msra.mxu0 0.0
        %1902 = vmatprep.subr.mxu0 0.0
        %1903 = vmatpush2.msra.mxu0 0.0
        %1904 = vmatprep.subr.mxu0 0.0
        %1905 = vmatpush2.msra.mxu0 0.0
        %1906 = vmatprep.subr.mxu0 0.0
        %1907 = vmatpush2.msra.mxu0 0.0
        %1908 = vmatprep.subr.mxu0 0.0
        %1909 = vmatpush2.msra.mxu0 0.0
        %1910 = vmatprep.subr.mxu0 0.0
        %1911 = vmatpush2.msra.mxu0 0.0
        %1912 = vmatprep.subr.mxu0 0.0
        %1913 = vmatpush2.msra.mxu0 0.0
        %1914 = vmatprep.subr.mxu0 0.0
        %1915 = vmatpush2.msra.mxu0 0.0
        %1916 = vmatprep.mubr.f32.mxu0 0.0
        %1917 = vmatmul.mubr.f32.gmra.mxu0 %v1850
        %v1918 = vpop.f32.mrf.mxu0
        %v1919 = vadd.f32 %v1847, %v1918
        %v1920 = vpop.f32.mrf.mxu0
        %1921 = vdwg.mxu0
        %v1922 = vadd.f32 %v1919, %v1748
        %v1923 = vld [vmem:[%s13] sm:$0x1]
        %v1924 = vld [vmem:[%s14] sm:$0x1]
        %v1925 = vsel %vm533, %v1922, 0.0
        %1926 = vadd.xlane.f32.xlu0 %v1925
        %v1927 = vpop.xlane.xlu0 %1926
        %v1928 = vmul.f32 %v1927, %v1533
        %v1929 = vsub.f32 %v1922, %v1928
        %v1930 = vmul.f32 %v1929, %v1929
        %v1931 = vsel %vm533, %v1930, 0.0
        %1932 = vadd.xlane.f32.xlu0 %v1931
        %v1933 = vpop.xlane.xlu0 %1932
        %v1934 = vmul.f32 %v1933, %v1540
        %v1935 = vrsqrt.pop %v1934
        %v1936 = vmul.f32 %v1934, %v1935
        %vm1937 = vcmp.eq.f32.partialorder %v1934, inf
        %v1938 = vsel %vm1937, %v1934, %v1936
        %vm1939 = vcmp.eq.f32.partialorder %v1934, 0.0
        %v1940 = vand.u32 %v1934, 2147483648
        %v1941 = vsel %vm1939, %v1940, %v1938
        %v1942 = vadd.f32 %v1941, 0.001
        %v1943 = vrcp.pop %v1942
        %v1944 = vmul.f32 %v1929, %v1943
        %v1946 = vlaneseq
        %v1947 = vshrl.u32 %v1946, 7
        %v1948 = vsub.s32 0, %v1947
        %v1949 = vrot.slane %v1923, %v1948
        %v1951 = vmul.f32 %v1944, %v1949
        %v1953 = vlaneseq
        %v1954 = vshrl.u32 %v1953, 7
        %v1955 = vsub.s32 0, %v1954
        %v1956 = vrot.slane %v1924, %v1955
        %v1958 = vadd.f32 %v1951, %v1956
        %1959 = vst.msk [vmem:[%s516] sm:$0xff] %vm533, %v1958
        %s1960 = sand.u32 %s362, 1
        %s1961 = scalar_lea.sflag [#allocation3], %s1960
        %s1962 = sand.u32 %s362, 1
        %s1963 = smul.addr %s1962, 8
        %s1964 = scalar_lea.vmem [#allocation2], %s1963
        %s1965 = sand.u32 %s388, 1
        %s1966 = scalar_lea.sflag [#allocation5], %s1965
        %s1967 = sand.u32 %s388, 1
        %s1968 = smul.addr %s1967, 32
        %s1969 = scalar_lea.vmem [#allocation4], %s1968
        // Predicated region
        $region81: #{tpu_custom_call.1} parent=79 // pred_check
          %p1970 = pneg %p372
        $region82: #{tpu_custom_call.1} parent=79 // pred_check_branch
          %1972 = sbr.rel (%p1970) target = $region84
        $region83: #{tpu_custom_call.1} parent=79 // pred_region
          %s1974 = ssub.s32 128, 128
          %1975 = vsyncadd %s1961, %s1974
          %s1976 = smul.addr %s34, 128
          %s1977 = scalar_lea.hbm %s15, %s1976
          %s1979 = sshll.u32 %s1964, 4
          %s1980 = int_to_ptr.vmem [resolvable:$true] %s1979
          %1982 = dma.vmem_to_hbm [thread:$0]  %s1980, 128, %s1977, %s1961
        $region84: #{tpu_custom_call.1} parent=79 // pred_fallthru
          _
        // Predicated region
        $region85: #{tpu_custom_call.1} parent=79 // pred_check
          %p1983 = pneg %p398
        $region86: #{tpu_custom_call.1} parent=79 // pred_check_branch
          %1985 = sbr.rel (%p1983) target = $region88
        $region87: #{tpu_custom_call.1} parent=79 // pred_region
          %s1987 = ssub.s32 512, 512
          %1988 = vsyncadd %s1966, %s1987
          %s1989 = smul.addr %s34, 128
          %s1990 = scalar_lea.hbm %s16, %s1989
          %s1991 = sshll.u32 %s1969, 4
          %s1992 = int_to_ptr.vmem [resolvable:$true] %s1991
          %1997 = dma.vmem_to_hbm [thread:$0]  %s1992, 512, %s1990, %s1966, 128, 256, 8
        $region88: #{tpu_custom_call.1} parent=79 // pred_fallthru
          _
      $region80: #{tpu_custom_call.1} parent=5 // pred_fallthru
        _
      %p1998 = scmp.le.s32.totalorder 2, %s29
      // Predicated region
      $region89: #{tpu_custom_call.1} parent=5 // pred_check
        %p1999 = pneg %p1998
      $region90: #{tpu_custom_call.1} parent=5 // pred_check_branch
        %2001 = sbr.rel (%p1999) target = $region92
      $region91: #{tpu_custom_call.1} parent=5 // pred_region
        %s2002 = ssub.s32 %s29, 2
        // Predicated region
        $region93: #{tpu_custom_call.1} parent=91 // pred_check
          %p2003 = pneg %p378
        $region94: #{tpu_custom_call.1} parent=91 // pred_check_branch
          %2005 = sbr.rel (%p2003) target = $region96
        $region95: #{tpu_custom_call.1} parent=91 // pred_region
          %s2006 = sand.u32 %s363, 1
          %s2007 = scalar_lea.sflag [#allocation3], %s2006
          %s2008 = sand.u32 %s363, 1
          %s2009 = smul.addr %s2008, 8
          %s2010 = scalar_lea.vmem [#allocation2], %s2009
          %2011 = dma.done %s2007, 128
        $region96: #{tpu_custom_call.1} parent=91 // pred_fallthru
          _
        // Predicated region
        $region97: #{tpu_custom_call.1} parent=91 // pred_check
          %p2012 = pneg %p404
        $region98: #{tpu_custom_call.1} parent=91 // pred_check_branch
          %2014 = sbr.rel (%p2012) target = $region100
        $region99: #{tpu_custom_call.1} parent=91 // pred_region
          %s2015 = sand.u32 %s389, 1
          %s2016 = scalar_lea.sflag [#allocation5], %s2015
          %s2017 = sand.u32 %s389, 1
          %s2018 = smul.addr %s2017, 32
          %s2019 = scalar_lea.vmem [#allocation4], %s2018
          %2020 = dma.done %s2016, 512
        $region100: #{tpu_custom_call.1} parent=91 // pred_fallthru
          _
      $region92: #{tpu_custom_call.1} parent=5 // pred_fallthru
        _
    $region6: #{tpu_custom_call.1} parent=1 // loop_footer
      %s33 = sadd.s32 1, %s29
    $region7: #{tpu_custom_call.1} parent=1 // loop_footer_branch
      %28 = sbr.rel target = $region3
    $region8: #{tpu_custom_call.1} parent=1 // loop_exit
      _
    %2021 = vsyncpa [#allocation3], 1
    %s2022 = scalar_lea.sflag [#allocation3], 1
    %2023 = vsyncpa %s2022, 1
    %2024 = vsyncpa [#allocation5], 1
    %s2025 = scalar_lea.sflag [#allocation5], 1
    %2026 = vsyncpa %s2025, 1

</llo_original>
